<compile_context>
chip_gen: v7x
topology: tpu7x:2x2x1
jax: 0.10.0
libtpu: 0.0.40
codegen_flags: <defaults>
</compile_context>

<pallas_src>
import functools

import jax
import jax.numpy as jnp
from jax import lax
from jax.experimental import pallas as pl
from jax.experimental.pallas import tpu as pltpu


# ----------------------------------------------------------------------------
# Deterministic parameter construction
# ----------------------------------------------------------------------------
def dft_matrixes(freq_samples, time_samples):
    """Partial DFT, shape (time_samples, freq_samples) = (512, 48)."""
    n = jnp.arange(time_samples, dtype=jnp.float32)[:, None]
    k = jnp.arange(freq_samples, dtype=jnp.float32)[None, :]
    ang = 2.0 * jnp.pi * n * k / float(time_samples)
    scale = 1.0 / jnp.sqrt(jnp.float32(time_samples))
    return (scale * jnp.cos(ang)).astype(jnp.float32), \
           (-scale * jnp.sin(ang)).astype(jnp.float32)


def pack_complex_rhs(w_re, w_im):
    """Packed real RHS so that [xr|xi] @ W == [ (x@w)_re | (x@w)_im ]."""
    top = jnp.concatenate([w_re, w_im], axis=-1)
    bot = jnp.concatenate([-w_im, w_re], axis=-1)
    return jnp.concatenate([top, bot], axis=-2)


def build_packed_weights(a_re, a_im, d_re, d_im, dtype=jnp.bfloat16):
    """a_re/a_im: (T, N, M) per-layer params; d_re/d_im: (N, M) final DFT.

    Returns W1 (T, 2M, 2N) for z@A^T, W2 (T, 2N, 2M) for H@A, W3 (2N, 2M) for
    the final H@DFT — all bf16, built ONCE on the host (hoisted out of the
    per-call traced path).
    """
    w1 = jax.vmap(lambda ar, ai: pack_complex_rhs(ar.T, ai.T))(a_re, a_im)
    w2 = jax.vmap(pack_complex_rhs)(a_re, a_im)
    w3 = pack_complex_rhs(d_re, d_im)
    return w1.astype(dtype), w2.astype(dtype), w3.astype(dtype)


# ----------------------------------------------------------------------------
# Fused multi-layer Pallas kernel (grid = (num_layers,))
# ----------------------------------------------------------------------------
def lamp_kernel(theta_ref,            # SMEM (T, 3) f32   (scalar prefetch)
                u_ref,                # VMEM (B, 2M) f32  resident
                w1_ref,               # VMEM (2M, 2N) bf16, layer l's packed A^T
                w2_ref,               # VMEM (2N, 2M) bf16, layer l's packed A
                w3_ref,               # VMEM (2N, 2M) bf16, packed final DFT, resident
                out_ref,              # VMEM (B, 2M) f32  (written at last layer)
                z_ref,                # VMEM scratch (B, 2M) f32 — state across layers
                h_state_ref,          # VMEM scratch (B, 2N) f32 — state across layers
                *, Np, M, N):
    l = pl.program_id(0)
    num_layers = pl.num_programs(0)

    # Layer 0: z <- u, H_hat <- 0 (the outer LAMP.forward initialization).
    @pl.when(l == 0)
    def _init():
        z_ref[...] = u_ref[...]
        h_state_ref[...] = jnp.zeros_like(h_state_ref)

    t0 = theta_ref[l, 0]
    t1 = theta_ref[l, 1]
    t2 = theta_ref[l, 2]

    u = u_ref[...]
    z = z_ref[...]                                    # [z_re | z_im], (B, 2M)

    # sigma^2 = ||stack(z_re, z_im)||_F^2 / Np   (Frobenius over the whole batch)
    sigma2 = jnp.sum(z * z) * (1.0 / Np)
    inv_s2 = 1.0 / sigma2

    # [Z_re | Z_im] = [z_re | z_im] @ [[Ar^T, Ai^T], [-Ai^T, Ar^T]]
    Z = jnp.dot(z.astype(w1_ref.dtype), w1_ref[...],
                preferred_element_type=jnp.float32)   # (B, 2N)
    R = h_state_ref[...] + Z

    # Exponential shrinkage eta and its derivative (Onsager term), q reused.
    q = (0.5 * t2 * inv_s2) * (R * R)
    e = jnp.exp(q)
    H_new = t0 * R + t1 * R * e                       # eta(R)
    d = t0 + t1 * e * (1.0 + 2.0 * q)                 # eta'(R)
    b_re = jnp.sum(d[:, :N]) * (1.0 / Np)
    b_im = jnp.sum(d[:, N:]) * (1.0 / Np)

    # [h_re | h_im] = [H_re | H_im] @ [[Ar, Ai], [-Ai, Ar]]
    h = jnp.dot(H_new.astype(w2_ref.dtype), w2_ref[...],
                preferred_element_type=jnp.float32)   # (B, 2M)

    # z' = u - h + [b_re * z_re | b_im * z_im]
    lane = lax.broadcasted_iota(jnp.int32, z.shape, 1)
    b_vec = jnp.where(lane < M, b_re, b_im)
    z_ref[...] = u - h + b_vec * z
    h_state_ref[...] = H_new

    # Final output matmul of LAMP.forward, fused into the last layer step.
    @pl.when(l == num_layers - 1)
    def _finalize():
        out_ref[...] = jnp.dot(H_new.astype(w3_ref.dtype), w3_ref[...],
                               preferred_element_type=jnp.float32)


@functools.partial(jax.jit, static_argnames=("normalize",))
def lamp_forward(u, theta_all, w1_all, w2_all, w3, normalize=True):
    """u: (B, 48, 2) f32.  Returns (B, 48, 2) f32 (the LAMP.forward output)."""
    T = theta_all.shape[0]
    B, M, _ = u.shape
    N = w1_all.shape[2] // 2
    Np = 48.0                       # hard-coded in the PyTorch module

    if normalize:
        maximum = jnp.abs(jnp.max(u))
        u = 5.0 * u / maximum

    # Pack re/im along lanes: (B, 2M) with [re | im].
    u_packed = jnp.concatenate([u[:, :, 0], u[:, :, 1]], axis=1)

    grid_spec = pltpu.PrefetchScalarGridSpec(
        num_scalar_prefetch=1,                       # theta_all -> SMEM
        grid=(T,),
        in_specs=[
            pl.BlockSpec((B, 2 * M), lambda l, th: (0, 0)),          # u (resident)
            pl.BlockSpec((None, 2 * M, 2 * N), lambda l, th: (l, 0, 0)),  # W1[l]
            pl.BlockSpec((None, 2 * N, 2 * M), lambda l, th: (l, 0, 0)),  # W2[l]
            pl.BlockSpec((2 * N, 2 * M), lambda l, th: (0, 0)),      # W3 (resident)
        ],
        out_specs=pl.BlockSpec((B, 2 * M), lambda l, th: (0, 0)),
        scratch_shapes=[
            pltpu.VMEM((B, 2 * M), jnp.float32),     # z state
            pltpu.VMEM((B, 2 * N), jnp.float32),     # H_hat state
        ],
    )

    out_packed = pl.pallas_call(
        functools.partial(lamp_kernel, Np=Np, M=M, N=N),
        out_shape=jax.ShapeDtypeStruct((B, 2 * M), jnp.float32),
        grid_spec=grid_spec,
        compiler_params=pltpu.CompilerParams(
            dimension_semantics=("arbitrary",)),     # layers are sequential
    )(theta_all, u_packed, w1_all, w2_all, w3)

    out = jnp.stack([out_packed[:, :M], out_packed[:, M:]], axis=2)
    if normalize:
        out = out / 5.0 * maximum
    return out


# ----------------------------------------------------------------------------
# Pure-JAX reference (f32 math, same per-layer weights) for correctness check
# ----------------------------------------------------------------------------
def lamp_reference(u, theta_all, a_re, a_im, d_re, d_im, normalize=True):
    T = theta_all.shape[0]
    Np = 48.0
    if normalize:
        maximum = jnp.abs(jnp.max(u))
        u = 5.0 * u / maximum
    u_re, u_im = u[:, :, 0], u[:, :, 1]
    z_re, z_im = u_re, u_im
    H_re = jnp.zeros((u.shape[0], a_re.shape[1]), jnp.float32)
    H_im = jnp.zeros_like(H_re)
    for l in range(T):
        t0, t1, t2 = theta_all[l]
        Ar, Ai = a_re[l], a_im[l]
        Z_re = z_re @ Ar.T - z_im @ Ai.T
        Z_im = z_re @ Ai.T + z_im @ Ar.T
        R_re = H_re + Z_re
        R_im = H_im + Z_im
        sigma2 = (jnp.sum(z_re ** 2) + jnp.sum(z_im ** 2)) / Np

        def eta(r):
            return t0 * r + t1 * r * jnp.exp(t2 * r * r / (2.0 * sigma2))

        def eta_prime(r):
            e = jnp.exp(t2 * r * r / (2.0 * sigma2))
            return t0 + t1 * e * (1.0 + t2 * r * r / sigma2)

        H_re, H_im = eta(R_re), eta(R_im)
        b_re = jnp.sum(eta_prime(R_re)) / Np
        b_im = jnp.sum(eta_prime(R_im)) / Np
        h_re = H_re @ Ar - H_im @ Ai
        h_im = H_re @ Ai + H_im @ Ar
        z_re = u_re - h_re + b_re * z_re
        z_im = u_im - h_im + b_im * z_im
    out_re = H_re @ d_re - H_im @ d_im
    out_im = H_re @ d_im + H_im @ d_re
    out = jnp.stack([out_re, out_im], axis=2)
    if normalize:
        out = out / 5.0 * maximum
    return out


if __name__ == "__main__":
    T = 4          # cfg.layers
    B = 8          # cfg.recived (batch of received symbols)
    M = 48         # pilots / frequency samples
    N = 512        # time samples

    D_re, D_im = dft_matrixes(M, N)                  # (512, 48)

    key = jax.random.PRNGKey(0)
    k_u, k_ar, k_ai, k_t = jax.random.split(key, 4)

    # Per-layer learnable A parameters: DFT init + a small deterministic
    # perturbation (stands in for training, exercises per-layer indexing).
    A_re = D_re[None] + 0.01 * jax.random.normal(k_ar, (T, N, M), dtype=jnp.float32)
    A_im = D_im[None] + 0.01 * jax.random.normal(k_ai, (T, N, M), dtype=jnp.float32)
    theta_all = (jnp.tile(jnp.array([1.0, 1.0, -1.0], jnp.float32), (T, 1))
                 + 0.01 * jax.random.normal(k_t, (T, 3), dtype=jnp.float32))

    u = jax.random.normal(k_u, (B, M, 2), dtype=jnp.float32)

    # bf16 weight storage (perf review): quantize once; the reference uses the
    # same quantized weights so the comparison isolates implementation error
    # from the documented bf16-weight precision policy.
    A_re_q = A_re.astype(jnp.bfloat16).astype(jnp.float32)
    A_im_q = A_im.astype(jnp.bfloat16).astype(jnp.float32)
    D_re_q = D_re.astype(jnp.bfloat16).astype(jnp.float32)
    D_im_q = D_im.astype(jnp.bfloat16).astype(jnp.float32)

    w1_all, w2_all, w3 = build_packed_weights(A_re_q, A_im_q, D_re_q, D_im_q)

    out = lamp_forward(u, theta_all, w1_all, w2_all, w3)
    out = jax.block_until_ready(out)

    ref = lamp_reference(u, theta_all, A_re_q, A_im_q, D_re_q, D_im_q)
    assert out.shape == ref.shape == (B, M, 2) and out.dtype == ref.dtype
    scale = jnp.max(jnp.abs(ref))
    err = jnp.max(jnp.abs(out - ref))
    # Scale-relative error bound: the untrained LAMP iteration amplifies the
    # state by |b| each layer, so per-entry rtol/atol are not meaningful.
    assert err <= 5e-2 * scale, (float(err), float(scale))
    print("KERNEL_OK")
</pallas_src>

<mosaic_0001>
module attributes {stable_mosaic.version = 11 : i64} {
  func.func @lamp_kernel(%arg0: i32, %arg1: memref<4x3xf32, #tpu.memory_space<smem>>, %arg2: memref<8x96xf32, #tpu.memory_space<vmem>>, %arg3: memref<1x96x1024xbf16, #tpu.memory_space<vmem>>, %arg4: memref<1x1024x96xbf16, #tpu.memory_space<vmem>>, %arg5: memref<1024x96xbf16, #tpu.memory_space<vmem>>, %arg6: memref<8x96xf32, #tpu.memory_space<vmem>>, %arg7: memref<8x96xf32, #tpu.memory_space<vmem>>, %arg8: memref<8x1024xf32, #tpu.memory_space<vmem>>) attributes {dimension_semantics = [#tpu.dimension_semantics<arbitrary>], iteration_bounds = array<i64: 4>, scalar_prefetch = 1 : i64, scratch_operands = 2 : i64, tpu.core_type = #tpu.core_type<tc>, window_params = [{pipeline_mode = #tpu.pipeline_mode<synchronous>, transform_indices = @transform_0, window_bounds = array<i64: 8, 96>}, {transform_indices = @transform_1, window_bounds = array<i64: 1, 96, 1024>}, {transform_indices = @transform_2, window_bounds = array<i64: 1, 1024, 96>}, {pipeline_mode = #tpu.pipeline_mode<synchronous>, transform_indices = @transform_3, window_bounds = array<i64: 1024, 96>}, {pipeline_mode = #tpu.pipeline_mode<synchronous>, transform_indices = @transform_4, window_bounds = array<i64: 8, 96>}]} {
    %c0_i32 = arith.constant 0 : i32
    %0 = arith.cmpi eq, %arg0, %c0_i32 : i32
    %1 = arith.extui %0 : i1 to i32
    %c0_i32_0 = arith.constant 0 : i32
    %2 = arith.cmpi ne, %1, %c0_i32_0 : i32
    scf.if %2 {
      %c0_29 = arith.constant 0 : index
      %c0_30 = arith.constant 0 : index
      %75 = vector.load %arg2[%c0_29, %c0_30] : memref<8x96xf32, #tpu.memory_space<vmem>>, vector<8x96xf32>
      %c0_31 = arith.constant 0 : index
      %c0_32 = arith.constant 0 : index
      %76 = vector.load %arg7[%c0_31, %c0_32] : memref<8x96xf32, #tpu.memory_space<vmem>>, vector<8x96xf32>
      tpu.vector_store %arg7[%c0_31, %c0_32], %75 {strides = array<i32>} : memref<8x96xf32, #tpu.memory_space<vmem>>, vector<8x96xf32>,
      %cst_33 = arith.constant 0.000000e+00 : f32
      %77 = vector.broadcast %cst_33 : f32 to vector<8x1024xf32>
      %c0_34 = arith.constant 0 : index
      %c0_35 = arith.constant 0 : index
      %78 = vector.load %arg8[%c0_34, %c0_35] : memref<8x1024xf32, #tpu.memory_space<vmem>>, vector<8x1024xf32>
      tpu.vector_store %arg8[%c0_34, %c0_35], %77 {strides = array<i32>} : memref<8x1024xf32, #tpu.memory_space<vmem>>, vector<8x1024xf32>,
    } else {
    }
    %3 = arith.index_cast %arg0 : i32 to index
    %c0 = arith.constant 0 : index
    %4 = memref.load %arg1[%3, %c0] : memref<4x3xf32, #tpu.memory_space<smem>>
    %5 = arith.index_cast %arg0 : i32 to index
    %c1 = arith.constant 1 : index
    %6 = memref.load %arg1[%5, %c1] : memref<4x3xf32, #tpu.memory_space<smem>>
    %7 = arith.index_cast %arg0 : i32 to index
    %c2 = arith.constant 2 : index
    %8 = memref.load %arg1[%7, %c2] : memref<4x3xf32, #tpu.memory_space<smem>>
    %c0_1 = arith.constant 0 : index
    %c0_2 = arith.constant 0 : index
    %9 = vector.load %arg2[%c0_1, %c0_2] : memref<8x96xf32, #tpu.memory_space<vmem>>, vector<8x96xf32>
    %c0_3 = arith.constant 0 : index
    %c0_4 = arith.constant 0 : index
    %10 = vector.load %arg7[%c0_3, %c0_4] : memref<8x96xf32, #tpu.memory_space<vmem>>, vector<8x96xf32>
    %11 = arith.mulf %10, %10 : vector<8x96xf32>
    %12 = vector.shape_cast %11 : vector<8x96xf32> to vector<1x8x96xf32>
    %cst = arith.constant dense<0.000000e+00> : vector<1xf32>
    %13 = vector.multi_reduction <add>, %12, %cst [1, 2] : vector<1x8x96xf32> to vector<1xf32>
    %14 = vector.shape_cast %13 : vector<1xf32> to vector<1x1x1xf32>
    %15 = vector.extract %14[0, 0, 0] : f32 from vector<1x1x1xf32>
    %cst_5 = arith.constant 0.020833334 : f32
    %16 = arith.mulf %15, %cst_5 : f32
    %cst_6 = arith.constant 1.000000e+00 : f32
    %17 = arith.divf %cst_6, %16 : f32
    %18 = arith.truncf %10 : vector<8x96xf32> to vector<8x96xbf16>
    %c0_7 = arith.constant 0 : index
    %c0_8 = arith.constant 0 : index
    %c0_9 = arith.constant 0 : index
    %19 = vector.load %arg3[%c0_7, %c0_8, %c0_9] : memref<1x96x1024xbf16, #tpu.memory_space<vmem>>, vector<1x96x1024xbf16>
    %20 = vector.shape_cast %19 : vector<1x96x1024xbf16> to vector<96x1024xbf16>
    %cst_10 = arith.constant dense<0.000000e+00> : vector<8x1024xf32>
    %21 = tpu.matmul %18, %20, %cst_10 {dimension_numbers = #tpu.dot_dimension_numbers<[1], [0], [0], [1], [0, 0, 1, 1], [], []>} : vector<8x96xbf16>, vector<96x1024xbf16>, vector<8x1024xf32> -> vector<8x1024xf32>
    %c0_11 = arith.constant 0 : index
    %c0_12 = arith.constant 0 : index
    %22 = vector.load %arg8[%c0_11, %c0_12] : memref<8x1024xf32, #tpu.memory_space<vmem>>, vector<8x1024xf32>
    %23 = arith.addf %22, %21 : vector<8x1024xf32>
    %cst_13 = arith.constant 5.000000e-01 : f32
    %24 = arith.mulf %cst_13, %8 : f32
    %25 = arith.mulf %24, %17 : f32
    %26 = arith.mulf %23, %23 : vector<8x1024xf32>
    %27 = vector.broadcast %25 : f32 to vector<8x1024xf32>
    %28 = arith.mulf %27, %26 : vector<8x1024xf32>
    %29 = math.exp %28 : vector<8x1024xf32>
    %30 = vector.broadcast %4 : f32 to vector<8x1024xf32>
    %31 = arith.mulf %30, %23 : vector<8x1024xf32>
    %32 = vector.broadcast %6 : f32 to vector<8x1024xf32>
    %33 = arith.mulf %32, %23 : vector<8x1024xf32>
    %34 = arith.mulf %33, %29 : vector<8x1024xf32>
    %35 = arith.addf %31, %34 : vector<8x1024xf32>
    %36 = vector.broadcast %6 : f32 to vector<8x1024xf32>
    %37 = arith.mulf %36, %29 : vector<8x1024xf32>
    %cst_14 = arith.constant 2.000000e+00 : f32
    %38 = vector.broadcast %cst_14 : f32 to vector<8x1024xf32>
    %39 = arith.mulf %38, %28 : vector<8x1024xf32>
    %cst_15 = arith.constant 1.000000e+00 : f32
    %40 = vector.broadcast %cst_15 : f32 to vector<8x1024xf32>
    %41 = arith.addf %40, %39 : vector<8x1024xf32>
    %42 = arith.mulf %37, %41 : vector<8x1024xf32>
    %43 = vector.broadcast %4 : f32 to vector<8x1024xf32>
    %44 = arith.addf %43, %42 : vector<8x1024xf32>
    %45 = vector.extract_strided_slice %44 {offsets = [0, 0], sizes = [8, 512], strides = [1, 1]} : vector<8x1024xf32> to vector<8x512xf32>
    %46 = vector.shape_cast %45 : vector<8x512xf32> to vector<1x8x512xf32>
    %cst_16 = arith.constant dense<0.000000e+00> : vector<1xf32>
    %47 = vector.multi_reduction <add>, %46, %cst_16 [1, 2] : vector<1x8x512xf32> to vector<1xf32>
    %48 = vector.shape_cast %47 : vector<1xf32> to vector<1x1x1xf32>
    %49 = vector.extract %48[0, 0, 0] : f32 from vector<1x1x1xf32>
    %cst_17 = arith.constant 0.020833334 : f32
    %50 = arith.mulf %49, %cst_17 : f32
    %51 = vector.extract_strided_slice %44 {offsets = [0, 512], sizes = [8, 512], strides = [1, 1]} : vector<8x1024xf32> to vector<8x512xf32>
    %52 = vector.shape_cast %51 : vector<8x512xf32> to vector<1x8x512xf32>
    %cst_18 = arith.constant dense<0.000000e+00> : vector<1xf32>
    %53 = vector.multi_reduction <add>, %52, %cst_18 [1, 2] : vector<1x8x512xf32> to vector<1xf32>
    %54 = vector.shape_cast %53 : vector<1xf32> to vector<1x1x1xf32>
    %55 = vector.extract %54[0, 0, 0] : f32 from vector<1x1x1xf32>
    %cst_19 = arith.constant 0.020833334 : f32
    %56 = arith.mulf %55, %cst_19 : f32
    %57 = arith.truncf %35 : vector<8x1024xf32> to vector<8x1024xbf16>
    %c0_20 = arith.constant 0 : index
    %c0_21 = arith.constant 0 : index
    %c0_22 = arith.constant 0 : index
    %58 = vector.load %arg4[%c0_20, %c0_21, %c0_22] : memref<1x1024x96xbf16, #tpu.memory_space<vmem>>, vector<1x1024x96xbf16>
    %59 = vector.shape_cast %58 : vector<1x1024x96xbf16> to vector<1024x96xbf16>
    %cst_23 = arith.constant dense<0.000000e+00> : vector<8x96xf32>
    %60 = tpu.matmul %57, %59, %cst_23 {dimension_numbers = #tpu.dot_dimension_numbers<[1], [0], [0], [1], [0, 0, 1, 1], [], []>} : vector<8x1024xbf16>, vector<1024x96xbf16>, vector<8x96xf32> -> vector<8x96xf32>
    %61 = tpu.iota {dimensions = array<i32: 1>} : vector<8x96xi32>
    %c48_i32 = arith.constant 48 : i32
    %62 = vector.broadcast %c48_i32 : i32 to vector<8x96xi32>
    %63 = arith.cmpi slt, %61, %62 : vector<8x96xi32>
    %64 = vector.broadcast %50 : f32 to vector<8x96xf32>
    %65 = vector.broadcast %56 : f32 to vector<8x96xf32>
    %66 = arith.select %63, %64, %65 : vector<8x96xi1>, vector<8x96xf32>
    %67 = arith.subf %9, %60 : vector<8x96xf32>
    %68 = arith.mulf %66, %10 : vector<8x96xf32>
    %69 = arith.addf %67, %68 : vector<8x96xf32>
    %c0_24 = arith.constant 0 : index
    %c0_25 = arith.constant 0 : index
    %70 = vector.load %arg7[%c0_24, %c0_25] : memref<8x96xf32, #tpu.memory_space<vmem>>, vector<8x96xf32>
    tpu.vector_store %arg7[%c0_24, %c0_25], %69 {strides = array<i32>} : memref<8x96xf32, #tpu.memory_space<vmem>>, vector<8x96xf32>,
    %c0_26 = arith.constant 0 : index
    %c0_27 = arith.constant 0 : index
    %71 = vector.load %arg8[%c0_26, %c0_27] : memref<8x1024xf32, #tpu.memory_space<vmem>>, vector<8x1024xf32>
    tpu.vector_store %arg8[%c0_26, %c0_27], %35 {strides = array<i32>} : memref<8x1024xf32, #tpu.memory_space<vmem>>, vector<8x1024xf32>,
    %c3_i32 = arith.constant 3 : i32
    %72 = arith.cmpi eq, %arg0, %c3_i32 : i32
    %73 = arith.extui %72 : i1 to i32
    %c0_i32_28 = arith.constant 0 : i32
    %74 = arith.cmpi ne, %73, %c0_i32_28 : i32
    scf.if %74 {
      %75 = arith.truncf %35 : vector<8x1024xf32> to vector<8x1024xbf16>
      %c0_29 = arith.constant 0 : index
      %c0_30 = arith.constant 0 : index
      %76 = vector.load %arg5[%c0_29, %c0_30] : memref<1024x96xbf16, #tpu.memory_space<vmem>>, vector<1024x96xbf16>
      %cst_31 = arith.constant dense<0.000000e+00> : vector<8x96xf32>
      %77 = tpu.matmul %75, %76, %cst_31 {dimension_numbers = #tpu.dot_dimension_numbers<[1], [0], [0], [1], [0, 0, 1, 1], [], []>} : vector<8x1024xbf16>, vector<1024x96xbf16>, vector<8x96xf32> -> vector<8x96xf32>
      %c0_32 = arith.constant 0 : index
      %c0_33 = arith.constant 0 : index
      %78 = vector.load %arg6[%c0_32, %c0_33] : memref<8x96xf32, #tpu.memory_space<vmem>>, vector<8x96xf32>
      tpu.vector_store %arg6[%c0_32, %c0_33], %77 {strides = array<i32>} : memref<8x96xf32, #tpu.memory_space<vmem>>, vector<8x96xf32>,
    } else {
    }
    return
  }
  func.func @transform_0(%arg0: i32, %arg1: memref<4x3xf32, #tpu.memory_space<smem>>) -> (i32, i32) {
    %c0_i32 = arith.constant 0 : i32
    %c0_i32_0 = arith.constant 0 : i32
    %c0_i32_1 = arith.constant 0 : i32
    return %c0_i32, %c0_i32_0 : i32, i32
  }
  func.func @transform_1(%arg0: i32, %arg1: memref<4x3xf32, #tpu.memory_space<smem>>) -> (i32, i32, i32) {
    %c0_i32 = arith.constant 0 : i32
    %c0_i32_0 = arith.constant 0 : i32
    %c0_i32_1 = arith.constant 0 : i32
    return %arg0, %c0_i32, %c0_i32_0 : i32, i32, i32
  }
  func.func @transform_2(%arg0: i32, %arg1: memref<4x3xf32, #tpu.memory_space<smem>>) -> (i32, i32, i32) {
    %c0_i32 = arith.constant 0 : i32
    %c0_i32_0 = arith.constant 0 : i32
    %c0_i32_1 = arith.constant 0 : i32
    return %arg0, %c0_i32, %c0_i32_0 : i32, i32, i32
  }
  func.func @transform_3(%arg0: i32, %arg1: memref<4x3xf32, #tpu.memory_space<smem>>) -> (i32, i32) {
    %c0_i32 = arith.constant 0 : i32
    %c0_i32_0 = arith.constant 0 : i32
    %c0_i32_1 = arith.constant 0 : i32
    return %c0_i32, %c0_i32_0 : i32, i32
  }
  func.func @transform_4(%arg0: i32, %arg1: memref<4x3xf32, #tpu.memory_space<smem>>) -> (i32, i32) {
    %c0_i32 = arith.constant 0 : i32
    %c0_i32_0 = arith.constant 0 : i32
    %c0_i32_1 = arith.constant 0 : i32
    return %c0_i32, %c0_i32_0 : i32, i32
  }
}

</mosaic_0001>

<llo_original>
// kernel: lamp_forward.1
$region0: #{lamp_forward.1}
  #allocation0 [shape = 'u32[]', space=smem, size = 0x4, offset = 0x4, fixed_abs, tag = 'smem constant byte address 0x4 - core index']
  #allocation1 [shape = 'u32[144,128]{1,0:T(1,128)}', space=vmem, size = 0x12000, scoped, tag = 'internal scratch']
  #allocation2 [shape = 'f32[8,96]{1,0:T(8,128)}', space=vmem, size = 0x1000, scoped, tag = 'scratch operand']
  #allocation3 [shape = 'f32[8,1024]{1,0:T(8,128)}', space=vmem, size = 0x8000, scoped, tag = 'scratch operand']
  #allocation4 [shape = 's32[1]{0}', space=sflag, size = 0x4, scoped, tag = 'scoped memory for lamp_forward.1']
  #allocation5 [shape = 'u8[2048]{0}', space=smem, size = 0x800, scoped, tag = 'prefetched SMEM operand 0']
  %s0 = inlined_call_operand.vmem [shape: f32[4,3], index: 0, kind: input, shape index: {}]
  %s1 = inlined_call_operand.vmem [shape: f32[8,96], index: 1, kind: input, shape index: {}]
  %s2 = inlined_call_operand.vmem [shape: bf16[4,96,1024], index: 2, kind: input, shape index: {}]
  %s3 = inlined_call_operand.vmem [shape: bf16[4,1024,96], index: 3, kind: input, shape index: {}]
  %s4 = inlined_call_operand.vmem [shape: bf16[1024,96], index: 4, kind: input, shape index: {}]
  %s5 = inlined_call_operand.vmem [shape: f32[8,96], index: 5, kind: output, shape index: {}]
  %s6 = sld [smem:[#allocation0]]
  $region57: #{lamp_forward.1} parent=0
    _
  %s8 = ssub.s32 1, %s6
  %s9 = scalar_select 0, %s8, %s6
  %s10 = sshll.u32 %s0, 4
  %s11 = int_to_ptr.vmem [resolvable:$true] %s10
  %13 = dma.vmem_to_smem %s11, 64, [#allocation5], [#allocation4]
  %14 = dma.done [#allocation4], 64
  %15 = sfence
  loop: start=0, step=1, limit=6
  $region2: #{lamp_forward.1} parent=0 // loop_pre_header
    _
  $region3: #{lamp_forward.1} parent=0 // loop_header
    %s17 = sphi 0, %s21
    %p18 = scmp.ge.s32.totalorder %s17, 6
    %s25 = sphi 0, %s25
    %s27 = sphi 0, %s25
    %s28 = sphi 0, %s27
    %s42 = sphi 0, %s28
    %s48 = sphi 0, %s50
    %s51 = sphi 0, %s48
    %s52 = sphi 0, %s51
    %s68 = sphi 0, %s52
    %s74 = sphi 0, %s76
    %s77 = sphi 0, %s74
    %s78 = sphi 0, %s77
    %s94 = sphi 0, %s78
    %s98 = sphi 0, %s98
    %s100 = sphi 0, %s98
    %s101 = sphi 0, %s100
    %s115 = sphi 0, %s101
    %s119 = sphi 0, %s119
    %s121 = sphi 0, %s119
    %s122 = sphi 0, %s121
    %s136 = sphi 0, %s122
  $region4: #{lamp_forward.1} parent=0 // loop_header_branch
    %20 = sbr.rel (%p18) target = $region8
  $region5: #{lamp_forward.1} parent=0 // loop_body
    %s22 = ssub.s32 %s17, 1
    %s23 = ssub.s32 %s17, 2
    %s24 = sadd.s32 %s17, 1
    %s26 = sadd.s32 %s25, 1
    %p29 = scmp.eq.s32.totalorder %s17, 3
    %p30 = scmp.ne.s32.totalorder %s25, %s27
    %p31 = scmp.eq.s32.totalorder %s17, 0
    %p32 = por %p30, %p31
    %p33 = scmp.ne.s32.totalorder %s25, %s27
    %p34 = scmp.eq.s32.totalorder %s22, 3
    %p35 = por %p33, %p34
    %p36 = scmp.ne.s32.totalorder %s27, %s28
    %p37 = scmp.eq.s32.totalorder %s22, 0
    %p38 = por %p36, %p37
    %p39 = scmp.ne.s32.totalorder %s27, %s28
    %p40 = scmp.eq.s32.totalorder %s23, 3
    %p41 = por %p39, %p40
    %p43 = scmp.ne.s32.totalorder %s28, %s42
    %p44 = scmp.eq.s32.totalorder %s23, 0
    %p45 = por %p43, %p44
    %s46 = ssub.s32 %s17, %s24
    %p47 = scmp.eq.s32.totalorder %s46, 0
    %s49 = sadd.s32 %s48, 1
    %s50 = scalar_select %p47, %s48, %s49
    %p53 = pneg %p47
    %p54 = scmp.eq.s32.totalorder %s17, 3
    %p55 = por %p53, %p54
    %p56 = scmp.ne.s32.totalorder %s48, %s51
    %p57 = scmp.eq.s32.totalorder %s17, 0
    %p58 = por %p56, %p57
    %p59 = scmp.ne.s32.totalorder %s48, %s51
    %p60 = scmp.eq.s32.totalorder %s22, 3
    %p61 = por %p59, %p60
    %p62 = scmp.ne.s32.totalorder %s51, %s52
    %p63 = scmp.eq.s32.totalorder %s22, 0
    %p64 = por %p62, %p63
    %p65 = scmp.ne.s32.totalorder %s51, %s52
    %p66 = scmp.eq.s32.totalorder %s23, 3
    %p67 = por %p65, %p66
    %p69 = scmp.ne.s32.totalorder %s52, %s68
    %p70 = scmp.eq.s32.totalorder %s23, 0
    %p71 = por %p69, %p70
    %s72 = ssub.s32 %s17, %s24
    %p73 = scmp.eq.s32.totalorder %s72, 0
    %s75 = sadd.s32 %s74, 1
    %s76 = scalar_select %p73, %s74, %s75
    %p79 = pneg %p73
    %p80 = scmp.eq.s32.totalorder %s17, 3
    %p81 = por %p79, %p80
    %p82 = scmp.ne.s32.totalorder %s74, %s77
    %p83 = scmp.eq.s32.totalorder %s17, 0
    %p84 = por %p82, %p83
    %p85 = scmp.ne.s32.totalorder %s74, %s77
    %p86 = scmp.eq.s32.totalorder %s22, 3
    %p87 = por %p85, %p86
    %p88 = scmp.ne.s32.totalorder %s77, %s78
    %p89 = scmp.eq.s32.totalorder %s22, 0
    %p90 = por %p88, %p89
    %p91 = scmp.ne.s32.totalorder %s77, %s78
    %p92 = scmp.eq.s32.totalorder %s23, 3
    %p93 = por %p91, %p92
    %p95 = scmp.ne.s32.totalorder %s78, %s94
    %p96 = scmp.eq.s32.totalorder %s23, 0
    %p97 = por %p95, %p96
    %s99 = sadd.s32 %s98, 1
    %p102 = scmp.eq.s32.totalorder %s17, 3
    %p103 = scmp.ne.s32.totalorder %s98, %s100
    %p104 = scmp.eq.s32.totalorder %s17, 0
    %p105 = por %p103, %p104
    %p106 = scmp.ne.s32.totalorder %s98, %s100
    %p107 = scmp.eq.s32.totalorder %s22, 3
    %p108 = por %p106, %p107
    %p109 = scmp.ne.s32.totalorder %s100, %s101
    %p110 = scmp.eq.s32.totalorder %s22, 0
    %p111 = por %p109, %p110
    %p112 = scmp.ne.s32.totalorder %s100, %s101
    %p113 = scmp.eq.s32.totalorder %s23, 3
    %p114 = por %p112, %p113
    %p116 = scmp.ne.s32.totalorder %s101, %s115
    %p117 = scmp.eq.s32.totalorder %s23, 0
    %p118 = por %p116, %p117
    %s120 = sadd.s32 %s119, 1
    %p123 = scmp.eq.s32.totalorder %s17, 3
    %p124 = scmp.ne.s32.totalorder %s119, %s121
    %p125 = scmp.eq.s32.totalorder %s17, 0
    %p126 = por %p124, %p125
    %p127 = scmp.ne.s32.totalorder %s119, %s121
    %p128 = scmp.eq.s32.totalorder %s22, 3
    %p129 = por %p127, %p128
    %p130 = scmp.ne.s32.totalorder %s121, %s122
    %p131 = scmp.eq.s32.totalorder %s22, 0
    %p132 = por %p130, %p131
    %p133 = scmp.ne.s32.totalorder %s121, %s122
    %p134 = scmp.eq.s32.totalorder %s23, 3
    %p135 = por %p133, %p134
    %p137 = scmp.ne.s32.totalorder %s122, %s136
    %p138 = scmp.eq.s32.totalorder %s23, 0
    %p139 = por %p137, %p138
    %p140 = scmp.le.s32.totalorder 1, %s17
    %p141 = scmp.lt.s32.totalorder %s17, 5
    %p142 = pnand %p140, %p141
    %p143 = pneg %p142
    // Predicated region
    $region9: #{lamp_forward.1} parent=5 // pred_check
      _
    $region10: #{lamp_forward.1} parent=5 // pred_check_branch
      %145 = sbr.rel (%p142) target = $region12
    $region11: #{lamp_forward.1} parent=5 // pred_region
      %s146 = ssub.s32 %s17, 1
      // Predicated region
      $region13: #{lamp_forward.1} parent=11 // pred_check
        %p147 = pneg %p38
      $region14: #{lamp_forward.1} parent=11 // pred_check_branch
        %149 = sbr.rel (%p147) target = $region16
      $region15: #{lamp_forward.1} parent=11 // pred_region
        _
      $region16: #{lamp_forward.1} parent=11 // pred_fallthru
        _
      // Predicated region
      $region17: #{lamp_forward.1} parent=11 // pred_check
        %p150 = pneg %p111
      $region18: #{lamp_forward.1} parent=11 // pred_check_branch
        %152 = sbr.rel (%p150) target = $region20
      $region19: #{lamp_forward.1} parent=11 // pred_region
        _
      $region20: #{lamp_forward.1} parent=11 // pred_fallthru
        _
    $region12: #{lamp_forward.1} parent=5 // pred_fallthru
      _
    %p153 = scmp.lt.s32.totalorder %s17, 4
    // Predicated region
    $region21: #{lamp_forward.1} parent=5 // pred_check
      %p154 = pneg %p153
    $region22: #{lamp_forward.1} parent=5 // pred_check_branch
      %156 = sbr.rel (%p154) target = $region24
    $region23: #{lamp_forward.1} parent=5 // pred_region
      // Predicated region
      $region25: #{lamp_forward.1} parent=23 // pred_check
        %p157 = pneg %p58
      $region26: #{lamp_forward.1} parent=23 // pred_check_branch
        %159 = sbr.rel (%p157) target = $region28
      $region27: #{lamp_forward.1} parent=23 // pred_region
        %p160 = scmp.lt.s32.totalorder %s17, 3
        %s161 = scalar_select %p160, %s17, 3
        %s162 = smul.addr %s161, 96
        %s163 = smul.addr %s162, 4
        %s164 = scalar_lea.vmem %s2, %s163
      $region28: #{lamp_forward.1} parent=23 // pred_fallthru
        _
      // Predicated region
      $region29: #{lamp_forward.1} parent=23 // pred_check
        %p165 = pneg %p84
      $region30: #{lamp_forward.1} parent=23 // pred_check_branch
        %167 = sbr.rel (%p165) target = $region32
      $region31: #{lamp_forward.1} parent=23 // pred_region
        %p168 = scmp.lt.s32.totalorder %s17, 3
        %s169 = scalar_select %p168, %s17, 3
        %s170 = smul.addr %s169, 128
        %s171 = smul.addr %s170, 4
        %s172 = scalar_lea.vmem %s3, %s171
      $region32: #{lamp_forward.1} parent=23 // pred_fallthru
        _
    $region24: #{lamp_forward.1} parent=5 // pred_fallthru
      _
    %p173 = scmp.le.s32.totalorder 1, %s17
    %p174 = scmp.lt.s32.totalorder %s17, 5
    %p175 = pnand %p173, %p174
    %p176 = pneg %p175
    // Predicated region
    $region33: #{lamp_forward.1} parent=5 // pred_check
      _
    $region34: #{lamp_forward.1} parent=5 // pred_check_branch
      %178 = sbr.rel (%p175) target = $region36
    $region35: #{lamp_forward.1} parent=5 // pred_region
      %s179 = ssub.s32 %s17, 1
      %p180 = pneg %p38
      %p181 = pneg %p35
      %p182 = scmp.lt.s32.totalorder %s22, 3
      %s183 = scalar_select %p182, %s22, 3
      %s184 = smul.addr %s183, 96
      %s185 = smul.addr %s184, 4
      %s186 = scalar_lea.vmem %s2, %s185
      %p187 = pneg %p64
      %p188 = pneg %p61
      %p189 = scmp.lt.s32.totalorder %s22, 3
      %s190 = scalar_select %p189, %s22, 3
      %s191 = smul.addr %s190, 128
      %s192 = smul.addr %s191, 4
      %s193 = scalar_lea.vmem %s3, %s192
      %p194 = pneg %p90
      %p195 = pneg %p87
      %p196 = pneg %p111
      %p197 = pneg %p108
      %p198 = pneg %p132
      %p199 = pneg %p129
      %p200 = scmp.lt.s32.totalorder %s22, 3
      %s201 = scalar_select %p200, %s22, 3
      %s202 = smul.addr %s201, 96
      %s203 = smul.addr %s202, 4
      %s204 = scalar_lea.vmem %s2, %s203
      %p205 = scmp.lt.s32.totalorder %s22, 3
      %s206 = scalar_select %p205, %s22, 3
      %s207 = smul.addr %s206, 128
      %s208 = smul.addr %s207, 4
      %s209 = scalar_lea.vmem %s3, %s208
      %p211 = scmp.eq.s32.totalorder %s22, 0
      // Predicated region
      $region37: #{lamp_forward.1} parent=35 // pred_check
        %p212 = pneg %p211
      $region38: #{lamp_forward.1} parent=35 // pred_check_branch
        %214 = sbr.rel (%p212) target = $region40
      $region39: #{lamp_forward.1} parent=35 // pred_region
        %v215 = vld [vmem:[%s1] sm:$0xff]
        %vm216 = vcmask 785408
        %217 = vst.msk [vmem:[#allocation2] sm:$0xff] %vm216, %v215
        %218 = vst [vmem:[#allocation3] sm:$0xff] 0.0
        %219 = vst [vmem:[#allocation3 + $0x8] sm:$0xff] 0.0
        %220 = vst [vmem:[#allocation3 + $0x10] sm:$0xff] 0.0
        %221 = vst [vmem:[#allocation3 + $0x18] sm:$0xff] 0.0
        %222 = vst [vmem:[#allocation3 + $0x20] sm:$0xff] 0.0
        %223 = vst [vmem:[#allocation3 + $0x28] sm:$0xff] 0.0
        %224 = vst [vmem:[#allocation3 + $0x30] sm:$0xff] 0.0
        %225 = vst [vmem:[#allocation3 + $0x38] sm:$0xff] 0.0
      $region40: #{lamp_forward.1} parent=35 // pred_fallthru
        _
      %s226 = smul.u32 %s22, 128
      %s227 = sld [smem:[#allocation5 + %s226]]
      %s228 = sadd.s32 %s226, 1
      %s229 = sld [smem:[#allocation5 + %s228]]
      %s230 = sadd.s32 %s226, 2
      %s231 = sld [smem:[#allocation5 + %s230]]
      %v232 = vld [vmem:[%s1] sm:$0xff]
      %v233 = vld [vmem:[#allocation2] sm:$0xff]
      %v234 = vmul.f32 %v233, %v233
      %vm235 = vcmask 785408
      %v236 = vsel %vm235, %v234, 0.0
      %237 = vadd.xlane.f32.xlu0 %v236
      %v238 = vpop.xlane.xlu0 %237
      %v239 = vrot.slane %v238, 4
      %v240 = vadd.f32 %v238, %v239
      %v241 = vrot.slane %v240, 2
      %v242 = vadd.f32 %v240, %v241
      %v243 = vrot.slane %v242, 1
      %v244 = vadd.f32 %v242, %v243
      %s245 = vtos %v244
      %s246 = smul.f32 %s245, 0.020833334
      %v247 = vstv %s246
      %v248 = vrcp.pop %v247
      %s249 = vtos %v248
      %v250 = vpack.c.bf16 %v233, %v233
      %v251 = vld [vmem:[%s204] sm:$0xff]
      %v252 = vld [vmem:[%s204 + $0x8] sm:$0xff]
      %v253 = vld [vmem:[%s204 + $0x10] sm:$0xff]
      %v254 = vld [vmem:[%s204 + $0x18] sm:$0xff]
      %v255 = vld [vmem:[%s204 + $0x20] sm:$0xff]
      %v256 = vld [vmem:[%s204 + $0x28] sm:$0xff]
      %v257 = vld [vmem:[%s204 + $0x30] sm:$0xff]
      %v258 = vld [vmem:[%s204 + $0x38] sm:$0xff]
      %v259 = vld [vmem:[%s204 + $0x40] sm:$0xff]
      %v260 = vld [vmem:[%s204 + $0x48] sm:$0xff]
      %v261 = vld [vmem:[%s204 + $0x50] sm:$0xff]
      %v262 = vld [vmem:[%s204 + $0x58] sm:$0xff]
      %v263 = vld [vmem:[%s204 + $0x60] sm:$0xff]
      %v264 = vld [vmem:[%s204 + $0x68] sm:$0xff]
      %v265 = vld [vmem:[%s204 + $0x70] sm:$0xff]
      %v266 = vld [vmem:[%s204 + $0x78] sm:$0xff]
      %v267 = vld [vmem:[%s204 + $0x80] sm:$0xff]
      %v268 = vld [vmem:[%s204 + $0x88] sm:$0xff]
      %v269 = vld [vmem:[%s204 + $0x90] sm:$0xff]
      %v270 = vld [vmem:[%s204 + $0x98] sm:$0xff]
      %v271 = vld [vmem:[%s204 + $0xa0] sm:$0xff]
      %v272 = vld [vmem:[%s204 + $0xa8] sm:$0xff]
      %v273 = vld [vmem:[%s204 + $0xb0] sm:$0xff]
      %v274 = vld [vmem:[%s204 + $0xb8] sm:$0xff]
      %v275 = vld [vmem:[%s204 + $0xc0] sm:$0xff]
      %v276 = vld [vmem:[%s204 + $0xc8] sm:$0xff]
      %v277 = vld [vmem:[%s204 + $0xd0] sm:$0xff]
      %v278 = vld [vmem:[%s204 + $0xd8] sm:$0xff]
      %v279 = vld [vmem:[%s204 + $0xe0] sm:$0xff]
      %v280 = vld [vmem:[%s204 + $0xe8] sm:$0xff]
      %v281 = vld [vmem:[%s204 + $0xf0] sm:$0xff]
      %v282 = vld [vmem:[%s204 + $0xf8] sm:$0xff]
      %v283 = vld [vmem:[%s204 + $0x100] sm:$0xff]
      %v284 = vld [vmem:[%s204 + $0x108] sm:$0xff]
      %v285 = vld [vmem:[%s204 + $0x110] sm:$0xff]
      %v286 = vld [vmem:[%s204 + $0x118] sm:$0xff]
      %v287 = vld [vmem:[%s204 + $0x120] sm:$0xff]
      %v288 = vld [vmem:[%s204 + $0x128] sm:$0xff]
      %v289 = vld [vmem:[%s204 + $0x130] sm:$0xff]
      %v290 = vld [vmem:[%s204 + $0x138] sm:$0xff]
      %v291 = vld [vmem:[%s204 + $0x140] sm:$0xff]
      %v292 = vld [vmem:[%s204 + $0x148] sm:$0xff]
      %v293 = vld [vmem:[%s204 + $0x150] sm:$0xff]
      %v294 = vld [vmem:[%s204 + $0x158] sm:$0xff]
      %v295 = vld [vmem:[%s204 + $0x160] sm:$0xff]
      %v296 = vld [vmem:[%s204 + $0x168] sm:$0xff]
      %v297 = vld [vmem:[%s204 + $0x170] sm:$0xff]
      %v298 = vld [vmem:[%s204 + $0x178] sm:$0xff]
      %v347 = vunpack.c.l.b16 %v251
      %v348 = vunpack.c.h.b16 %v251
      %v349 = vunpack.c.l.b16 %v252
      %v350 = vunpack.c.h.b16 %v252
      %v351 = vunpack.c.l.b16 %v253
      %v352 = vunpack.c.h.b16 %v253
      %v353 = vunpack.c.l.b16 %v254
      %v354 = vunpack.c.h.b16 %v254
      %v355 = vunpack.c.l.b16 %v255
      %v356 = vunpack.c.h.b16 %v255
      %v357 = vunpack.c.l.b16 %v256
      %v358 = vunpack.c.h.b16 %v256
      %v359 = vunpack.c.l.b16 %v257
      %v360 = vunpack.c.h.b16 %v257
      %v361 = vunpack.c.l.b16 %v258
      %v362 = vunpack.c.h.b16 %v258
      %v363 = vunpack.c.l.b16 %v259
      %v364 = vunpack.c.h.b16 %v259
      %v365 = vunpack.c.l.b16 %v260
      %v366 = vunpack.c.h.b16 %v260
      %v367 = vunpack.c.l.b16 %v261
      %v368 = vunpack.c.h.b16 %v261
      %v369 = vunpack.c.l.b16 %v262
      %v370 = vunpack.c.h.b16 %v262
      %v371 = vunpack.c.l.b16 %v263
      %v372 = vunpack.c.h.b16 %v263
      %v373 = vunpack.c.l.b16 %v264
      %v374 = vunpack.c.h.b16 %v264
      %v375 = vunpack.c.l.b16 %v265
      %v376 = vunpack.c.h.b16 %v265
      %v377 = vunpack.c.l.b16 %v266
      %v378 = vunpack.c.h.b16 %v266
      %v379 = vunpack.c.l.b16 %v267
      %v380 = vunpack.c.h.b16 %v267
      %v381 = vunpack.c.l.b16 %v268
      %v382 = vunpack.c.h.b16 %v268
      %v383 = vunpack.c.l.b16 %v269
      %v384 = vunpack.c.h.b16 %v269
      %v385 = vunpack.c.l.b16 %v270
      %v386 = vunpack.c.h.b16 %v270
      %v387 = vunpack.c.l.b16 %v271
      %v388 = vunpack.c.h.b16 %v271
      %v389 = vunpack.c.l.b16 %v272
      %v390 = vunpack.c.h.b16 %v272
      %v391 = vunpack.c.l.b16 %v273
      %v392 = vunpack.c.h.b16 %v273
      %v393 = vunpack.c.l.b16 %v274
      %v394 = vunpack.c.h.b16 %v274
      %v395 = vunpack.c.l.b16 %v275
      %v396 = vunpack.c.h.b16 %v275
      %v397 = vunpack.c.l.b16 %v276
      %v398 = vunpack.c.h.b16 %v276
      %v399 = vunpack.c.l.b16 %v277
      %v400 = vunpack.c.h.b16 %v277
      %v401 = vunpack.c.l.b16 %v278
      %v402 = vunpack.c.h.b16 %v278
      %v403 = vunpack.c.l.b16 %v279
      %v404 = vunpack.c.h.b16 %v279
      %v405 = vunpack.c.l.b16 %v280
      %v406 = vunpack.c.h.b16 %v280
      %v407 = vunpack.c.l.b16 %v281
      %v408 = vunpack.c.h.b16 %v281
      %v409 = vunpack.c.l.b16 %v282
      %v410 = vunpack.c.h.b16 %v282
      %v411 = vunpack.c.l.b16 %v283
      %v412 = vunpack.c.h.b16 %v283
      %v413 = vunpack.c.l.b16 %v284
      %v414 = vunpack.c.h.b16 %v284
      %v415 = vunpack.c.l.b16 %v285
      %v416 = vunpack.c.h.b16 %v285
      %v417 = vunpack.c.l.b16 %v286
      %v418 = vunpack.c.h.b16 %v286
      %v419 = vunpack.c.l.b16 %v287
      %v420 = vunpack.c.h.b16 %v287
      %v421 = vunpack.c.l.b16 %v288
      %v422 = vunpack.c.h.b16 %v288
      %v423 = vunpack.c.l.b16 %v289
      %v424 = vunpack.c.h.b16 %v289
      %v425 = vunpack.c.l.b16 %v290
      %v426 = vunpack.c.h.b16 %v290
      %v427 = vunpack.c.l.b16 %v291
      %v428 = vunpack.c.h.b16 %v291
      %v429 = vunpack.c.l.b16 %v292
      %v430 = vunpack.c.h.b16 %v292
      %v431 = vunpack.c.l.b16 %v293
      %v432 = vunpack.c.h.b16 %v293
      %v433 = vunpack.c.l.b16 %v294
      %v434 = vunpack.c.h.b16 %v294
      %v435 = vunpack.c.l.b16 %v295
      %v436 = vunpack.c.h.b16 %v295
      %v437 = vunpack.c.l.b16 %v296
      %v438 = vunpack.c.h.b16 %v296
      %v439 = vunpack.c.l.b16 %v297
      %v440 = vunpack.c.h.b16 %v297
      %v441 = vunpack.c.l.b16 %v298
      %v442 = vunpack.c.h.b16 %v298
      %v443 = vpack.c.b16 %v355, %v347
      %v444 = vpack.c.b16 %v356, %v348
      %v445 = vpack.c.b16 %v357, %v349
      %v446 = vpack.c.b16 %v358, %v350
      %v447 = vpack.c.b16 %v359, %v351
      %v448 = vpack.c.b16 %v360, %v352
      %v449 = vpack.c.b16 %v361, %v353
      %v450 = vpack.c.b16 %v362, %v354
      %v451 = vpack.c.b16 %v371, %v363
      %v452 = vpack.c.b16 %v372, %v364
      %v453 = vpack.c.b16 %v373, %v365
      %v454 = vpack.c.b16 %v374, %v366
      %v455 = vpack.c.b16 %v375, %v367
      %v456 = vpack.c.b16 %v376, %v368
      %v457 = vpack.c.b16 %v377, %v369
      %v458 = vpack.c.b16 %v378, %v370
      %v459 = vpack.c.b16 %v387, %v379
      %v460 = vpack.c.b16 %v388, %v380
      %v461 = vpack.c.b16 %v389, %v381
      %v462 = vpack.c.b16 %v390, %v382
      %v463 = vpack.c.b16 %v391, %v383
      %v464 = vpack.c.b16 %v392, %v384
      %v465 = vpack.c.b16 %v393, %v385
      %v466 = vpack.c.b16 %v394, %v386
      %v467 = vpack.c.b16 %v403, %v395
      %v468 = vpack.c.b16 %v404, %v396
      %v469 = vpack.c.b16 %v405, %v397
      %v470 = vpack.c.b16 %v406, %v398
      %v471 = vpack.c.b16 %v407, %v399
      %v472 = vpack.c.b16 %v408, %v400
      %v473 = vpack.c.b16 %v409, %v401
      %v474 = vpack.c.b16 %v410, %v402
      %v475 = vpack.c.b16 %v419, %v411
      %v476 = vpack.c.b16 %v420, %v412
      %v477 = vpack.c.b16 %v421, %v413
      %v478 = vpack.c.b16 %v422, %v414
      %v479 = vpack.c.b16 %v423, %v415
      %v480 = vpack.c.b16 %v424, %v416
      %v481 = vpack.c.b16 %v425, %v417
      %v482 = vpack.c.b16 %v426, %v418
      %v483 = vpack.c.b16 %v435, %v427
      %v484 = vpack.c.b16 %v436, %v428
      %v485 = vpack.c.b16 %v437, %v429
      %v486 = vpack.c.b16 %v438, %v430
      %v487 = vpack.c.b16 %v439, %v431
      %v488 = vpack.c.b16 %v440, %v432
      %v489 = vpack.c.b16 %v441, %v433
      %v490 = vpack.c.b16 %v442, %v434
      %v540 = vsel %vm235, %v250, 0
      %542 = vmatprep.subr.bf16.mxu0 %v444
      %543 = vmatpush1.bf16.msra.mxu0 %v443
      %544 = vmatprep.subr.bf16.mxu0 %v452
      %545 = vmatpush1.bf16.msra.mxu0 %v451
      %546 = vmatprep.subr.bf16.mxu0 %v460
      %547 = vmatpush1.bf16.msra.mxu0 %v459
      %548 = vmatprep.subr.bf16.mxu0 %v468
      %549 = vmatpush1.bf16.msra.mxu0 %v467
      %550 = vmatprep.subr.bf16.mxu0 %v476
      %551 = vmatpush1.bf16.msra.mxu0 %v475
      %552 = vmatprep.subr.bf16.mxu0 %v484
      %553 = vmatpush1.bf16.msra.mxu0 %v483
      %554 = vmatprep.subr.bf16.mxu0 0
      %555 = vmatpush1.bf16.msra.mxu0 0
      %556 = vmatprep.subr.bf16.mxu0 0
      %557 = vmatpush1.bf16.msra.mxu0 0
      %558 = vmatprep.subr.bf16.mxu0 0
      %559 = vmatpush1.bf16.msra.mxu0 0
      %560 = vmatprep.subr.bf16.mxu0 0
      %561 = vmatpush1.bf16.msra.mxu0 0
      %562 = vmatprep.subr.bf16.mxu0 0
      %563 = vmatpush1.bf16.msra.mxu0 0
      %564 = vmatprep.subr.bf16.mxu0 0
      %565 = vmatpush1.bf16.msra.mxu0 0
      %566 = vmatprep.subr.bf16.mxu0 0
      %567 = vmatpush1.bf16.msra.mxu0 0
      %568 = vmatprep.subr.bf16.mxu0 0
      %569 = vmatpush1.bf16.msra.mxu0 0
      %570 = vmatprep.subr.bf16.mxu0 0
      %571 = vmatpush1.bf16.msra.mxu0 0
      %572 = vmatprep.subr.bf16.mxu0 0
      %573 = vmatpush1.bf16.msra.mxu0 0
      %574 = vmatprep.mubr.bf16.mxu0 0
      %575 = vmatmul.mubr.bf16.gmra.mrb[0].mxu0 %v540
      %v576 = vpop.f32.mrb[0].mxu0
      %v577 = vadd.f32 0.0, %v576
      %v578 = vpop.f32.mrb[0].mxu0
      %v579 = vadd.f32 0.0, %v578
      %v580 = vpop.f32.mrb[0].mxu0
      %v581 = vpop.f32.mrb[0].mxu0
      %582 = vdwg.mxu0
      %583 = vmatprep.subr.bf16.mxu0 %v446
      %584 = vmatpush1.bf16.msra.mxu0 %v445
      %585 = vmatprep.subr.bf16.mxu0 %v454
      %586 = vmatpush1.bf16.msra.mxu0 %v453
      %587 = vmatprep.subr.bf16.mxu0 %v462
      %588 = vmatpush1.bf16.msra.mxu0 %v461
      %589 = vmatprep.subr.bf16.mxu0 %v470
      %590 = vmatpush1.bf16.msra.mxu0 %v469
      %591 = vmatprep.subr.bf16.mxu0 %v478
      %592 = vmatpush1.bf16.msra.mxu0 %v477
      %593 = vmatprep.subr.bf16.mxu0 %v486
      %594 = vmatpush1.bf16.msra.mxu0 %v485
      %595 = vmatprep.subr.bf16.mxu0 0
      %596 = vmatpush1.bf16.msra.mxu0 0
      %597 = vmatprep.subr.bf16.mxu0 0
      %598 = vmatpush1.bf16.msra.mxu0 0
      %599 = vmatprep.subr.bf16.mxu0 0
      %600 = vmatpush1.bf16.msra.mxu0 0
      %601 = vmatprep.subr.bf16.mxu0 0
      %602 = vmatpush1.bf16.msra.mxu0 0
      %603 = vmatprep.subr.bf16.mxu0 0
      %604 = vmatpush1.bf16.msra.mxu0 0
      %605 = vmatprep.subr.bf16.mxu0 0
      %606 = vmatpush1.bf16.msra.mxu0 0
      %607 = vmatprep.subr.bf16.mxu0 0
      %608 = vmatpush1.bf16.msra.mxu0 0
      %609 = vmatprep.subr.bf16.mxu0 0
      %610 = vmatpush1.bf16.msra.mxu0 0
      %611 = vmatprep.subr.bf16.mxu0 0
      %612 = vmatpush1.bf16.msra.mxu0 0
      %613 = vmatprep.subr.bf16.mxu0 0
      %614 = vmatpush1.bf16.msra.mxu0 0
      %615 = vmatprep.mubr.bf16.mxu0 0
      %616 = vmatmul.mubr.bf16.gmra.mrb[0].mxu0 %v540
      %v617 = vpop.f32.mrb[0].mxu0
      %v618 = vadd.f32 0.0, %v617
      %v619 = vpop.f32.mrb[0].mxu0
      %v620 = vadd.f32 0.0, %v619
      %v621 = vpop.f32.mrb[0].mxu0
      %v622 = vpop.f32.mrb[0].mxu0
      %623 = vdwg.mxu0
      %624 = vmatprep.subr.bf16.mxu0 %v448
      %625 = vmatpush1.bf16.msra.mxu0 %v447
      %626 = vmatprep.subr.bf16.mxu0 %v456
      %627 = vmatpush1.bf16.msra.mxu0 %v455
      %628 = vmatprep.subr.bf16.mxu0 %v464
      %629 = vmatpush1.bf16.msra.mxu0 %v463
      %630 = vmatprep.subr.bf16.mxu0 %v472
      %631 = vmatpush1.bf16.msra.mxu0 %v471
      %632 = vmatprep.subr.bf16.mxu0 %v480
      %633 = vmatpush1.bf16.msra.mxu0 %v479
      %634 = vmatprep.subr.bf16.mxu0 %v488
      %635 = vmatpush1.bf16.msra.mxu0 %v487
      %636 = vmatprep.subr.bf16.mxu0 0
      %637 = vmatpush1.bf16.msra.mxu0 0
      %638 = vmatprep.subr.bf16.mxu0 0
      %639 = vmatpush1.bf16.msra.mxu0 0
      %640 = vmatprep.subr.bf16.mxu0 0
      %641 = vmatpush1.bf16.msra.mxu0 0
      %642 = vmatprep.subr.bf16.mxu0 0
      %643 = vmatpush1.bf16.msra.mxu0 0
      %644 = vmatprep.subr.bf16.mxu0 0
      %645 = vmatpush1.bf16.msra.mxu0 0
      %646 = vmatprep.subr.bf16.mxu0 0
      %647 = vmatpush1.bf16.msra.mxu0 0
      %648 = vmatprep.subr.bf16.mxu0 0
      %649 = vmatpush1.bf16.msra.mxu0 0
      %650 = vmatprep.subr.bf16.mxu0 0
      %651 = vmatpush1.bf16.msra.mxu0 0
      %652 = vmatprep.subr.bf16.mxu0 0
      %653 = vmatpush1.bf16.msra.mxu0 0
      %654 = vmatprep.subr.bf16.mxu0 0
      %655 = vmatpush1.bf16.msra.mxu0 0
      %656 = vmatprep.mubr.bf16.mxu0 0
      %657 = vmatmul.mubr.bf16.gmra.mrb[0].mxu0 %v540
      %v658 = vpop.f32.mrb[0].mxu0
      %v659 = vadd.f32 0.0, %v658
      %v660 = vpop.f32.mrb[0].mxu0
      %v661 = vadd.f32 0.0, %v660
      %v662 = vpop.f32.mrb[0].mxu0
      %v663 = vpop.f32.mrb[0].mxu0
      %664 = vdwg.mxu0
      %665 = vmatprep.subr.bf16.mxu0 %v450
      %666 = vmatpush1.bf16.msra.mxu0 %v449
      %667 = vmatprep.subr.bf16.mxu0 %v458
      %668 = vmatpush1.bf16.msra.mxu0 %v457
      %669 = vmatprep.subr.bf16.mxu0 %v466
      %670 = vmatpush1.bf16.msra.mxu0 %v465
      %671 = vmatprep.subr.bf16.mxu0 %v474
      %672 = vmatpush1.bf16.msra.mxu0 %v473
      %673 = vmatprep.subr.bf16.mxu0 %v482
      %674 = vmatpush1.bf16.msra.mxu0 %v481
      %675 = vmatprep.subr.bf16.mxu0 %v490
      %676 = vmatpush1.bf16.msra.mxu0 %v489
      %677 = vmatprep.subr.bf16.mxu0 0
      %678 = vmatpush1.bf16.msra.mxu0 0
      %679 = vmatprep.subr.bf16.mxu0 0
      %680 = vmatpush1.bf16.msra.mxu0 0
      %681 = vmatprep.subr.bf16.mxu0 0
      %682 = vmatpush1.bf16.msra.mxu0 0
      %683 = vmatprep.subr.bf16.mxu0 0
      %684 = vmatpush1.bf16.msra.mxu0 0
      %685 = vmatprep.subr.bf16.mxu0 0
      %686 = vmatpush1.bf16.msra.mxu0 0
      %687 = vmatprep.subr.bf16.mxu0 0
      %688 = vmatpush1.bf16.msra.mxu0 0
      %689 = vmatprep.subr.bf16.mxu0 0
      %690 = vmatpush1.bf16.msra.mxu0 0
      %691 = vmatprep.subr.bf16.mxu0 0
      %692 = vmatpush1.bf16.msra.mxu0 0
      %693 = vmatprep.subr.bf16.mxu0 0
      %694 = vmatpush1.bf16.msra.mxu0 0
      %695 = vmatprep.subr.bf16.mxu0 0
      %696 = vmatpush1.bf16.msra.mxu0 0
      %697 = vmatprep.mubr.bf16.mxu0 0
      %698 = vmatmul.mubr.bf16.gmra.mrb[0].mxu0 %v540
      %v699 = vpop.f32.mrb[0].mxu0
      %v700 = vadd.f32 0.0, %v699
      %v701 = vpop.f32.mrb[0].mxu0
      %v702 = vadd.f32 0.0, %v701
      %v703 = vpop.f32.mrb[0].mxu0
      %v704 = vpop.f32.mrb[0].mxu0
      %705 = vdwg.mxu0
      %v706 = vld [vmem:[#allocation3] sm:$0xff]
      %v707 = vld [vmem:[#allocation3 + $0x8] sm:$0xff]
      %v708 = vld [vmem:[#allocation3 + $0x10] sm:$0xff]
      %v709 = vld [vmem:[#allocation3 + $0x18] sm:$0xff]
      %v710 = vld [vmem:[#allocation3 + $0x20] sm:$0xff]
      %v711 = vld [vmem:[#allocation3 + $0x28] sm:$0xff]
      %v712 = vld [vmem:[#allocation3 + $0x30] sm:$0xff]
      %v713 = vld [vmem:[#allocation3 + $0x38] sm:$0xff]
      %v714 = vadd.f32 %v706, %v577
      %v715 = vadd.f32 %v707, %v579
      %v716 = vadd.f32 %v708, %v618
      %v717 = vadd.f32 %v709, %v620
      %v718 = vadd.f32 %v710, %v659
      %v719 = vadd.f32 %v711, %v661
      %v720 = vadd.f32 %v712, %v700
      %v721 = vadd.f32 %v713, %v702
      %s722 = smul.f32 %s231, 0.5
      %s723 = smul.f32 %s722, %s249
      %v724 = vmul.f32 %v714, %v714
      %v725 = vmul.f32 %v715, %v715
      %v726 = vmul.f32 %v716, %v716
      %v727 = vmul.f32 %v717, %v717
      %v728 = vmul.f32 %v718, %v718
      %v729 = vmul.f32 %v719, %v719
      %v730 = vmul.f32 %v720, %v720
      %v731 = vmul.f32 %v721, %v721
      %v732 = vstv %s723
      %v733 = vmul.f32 %v732, %v724
      %v734 = vmul.f32 %v732, %v725
      %v735 = vmul.f32 %v732, %v726
      %v736 = vmul.f32 %v732, %v727
      %v737 = vmul.f32 %v732, %v728
      %v738 = vmul.f32 %v732, %v729
      %v739 = vmul.f32 %v732, %v730
      %v740 = vmul.f32 %v732, %v731
      %v741 = vmul.f32 %v733, 1.442695
      %v742 = vpow.pop %v741
      %v743 = vmul.f32 %v734, 1.442695
      %v744 = vpow.pop %v743
      %v745 = vmul.f32 %v735, 1.442695
      %v746 = vpow.pop %v745
      %v747 = vmul.f32 %v736, 1.442695
      %v748 = vpow.pop %v747
      %v749 = vmul.f32 %v737, 1.442695
      %v750 = vpow.pop %v749
      %v751 = vmul.f32 %v738, 1.442695
      %v752 = vpow.pop %v751
      %v753 = vmul.f32 %v739, 1.442695
      %v754 = vpow.pop %v753
      %v755 = vmul.f32 %v740, 1.442695
      %v756 = vpow.pop %v755
      %v757 = vstv %s227
      %v758 = vmul.f32 %v757, %v714
      %v759 = vmul.f32 %v757, %v715
      %v760 = vmul.f32 %v757, %v716
      %v761 = vmul.f32 %v757, %v717
      %v762 = vmul.f32 %v757, %v718
      %v763 = vmul.f32 %v757, %v719
      %v764 = vmul.f32 %v757, %v720
      %v765 = vmul.f32 %v757, %v721
      %v766 = vstv %s229
      %v767 = vmul.f32 %v766, %v714
      %v768 = vmul.f32 %v766, %v715
      %v769 = vmul.f32 %v766, %v716
      %v770 = vmul.f32 %v766, %v717
      %v771 = vmul.f32 %v766, %v718
      %v772 = vmul.f32 %v766, %v719
      %v773 = vmul.f32 %v766, %v720
      %v774 = vmul.f32 %v766, %v721
      %v775 = vmul.f32 %v767, %v742
      %v776 = vmul.f32 %v768, %v744
      %v777 = vmul.f32 %v769, %v746
      %v778 = vmul.f32 %v770, %v748
      %v779 = vmul.f32 %v771, %v750
      %v780 = vmul.f32 %v772, %v752
      %v781 = vmul.f32 %v773, %v754
      %v782 = vmul.f32 %v774, %v756
      %v783 = vadd.f32 %v758, %v775
      %v784 = vadd.f32 %v759, %v776
      %v785 = vadd.f32 %v760, %v777
      %v786 = vadd.f32 %v761, %v778
      %v787 = vadd.f32 %v762, %v779
      %v788 = vadd.f32 %v763, %v780
      %v789 = vadd.f32 %v764, %v781
      %v790 = vadd.f32 %v765, %v782
      %v791 = vmul.f32 %v766, %v742
      %v792 = vmul.f32 %v766, %v744
      %v793 = vmul.f32 %v766, %v746
      %v794 = vmul.f32 %v766, %v748
      %v795 = vmul.f32 %v766, %v750
      %v796 = vmul.f32 %v766, %v752
      %v797 = vmul.f32 %v766, %v754
      %v798 = vmul.f32 %v766, %v756
      %v799 = vmul.f32 %v733, 2.0
      %v800 = vmul.f32 %v734, 2.0
      %v801 = vmul.f32 %v735, 2.0
      %v802 = vmul.f32 %v736, 2.0
      %v803 = vmul.f32 %v737, 2.0
      %v804 = vmul.f32 %v738, 2.0
      %v805 = vmul.f32 %v739, 2.0
      %v806 = vmul.f32 %v740, 2.0
      %v807 = vadd.f32 %v799, 1.0
      %v808 = vadd.f32 %v800, 1.0
      %v809 = vadd.f32 %v801, 1.0
      %v810 = vadd.f32 %v802, 1.0
      %v811 = vadd.f32 %v803, 1.0
      %v812 = vadd.f32 %v804, 1.0
      %v813 = vadd.f32 %v805, 1.0
      %v814 = vadd.f32 %v806, 1.0
      %v815 = vmul.f32 %v791, %v807
      %v816 = vmul.f32 %v792, %v808
      %v817 = vmul.f32 %v793, %v809
      %v818 = vmul.f32 %v794, %v810
      %v819 = vmul.f32 %v795, %v811
      %v820 = vmul.f32 %v796, %v812
      %v821 = vmul.f32 %v797, %v813
      %v822 = vmul.f32 %v798, %v814
      %v823 = vadd.f32 %v757, %v815
      %v824 = vadd.f32 %v757, %v816
      %v825 = vadd.f32 %v757, %v817
      %v826 = vadd.f32 %v757, %v818
      %v827 = vadd.f32 %v757, %v819
      %v828 = vadd.f32 %v757, %v820
      %v829 = vadd.f32 %v757, %v821
      %v830 = vadd.f32 %v757, %v822
      %v831 = vadd.f32 %v823, %v824
      %v832 = vadd.f32 %v831, %v825
      %v833 = vadd.f32 %v832, %v826
      %834 = vadd.xlane.f32.xlu0 %v833
      %v835 = vpop.xlane.xlu0 %834
      %v836 = vrot.slane %v835, 4
      %v837 = vadd.f32 %v835, %v836
      %v838 = vrot.slane %v837, 2
      %v839 = vadd.f32 %v837, %v838
      %v840 = vrot.slane %v839, 1
      %v841 = vadd.f32 %v839, %v840
      %s842 = vtos %v841
      %s843 = smul.f32 %s842, 0.020833334
      %v844 = vadd.f32 %v827, %v828
      %v845 = vadd.f32 %v844, %v829
      %v846 = vadd.f32 %v845, %v830
      %847 = vadd.xlane.f32.xlu0 %v846
      %v848 = vpop.xlane.xlu0 %847
      %v849 = vrot.slane %v848, 4
      %v850 = vadd.f32 %v848, %v849
      %v851 = vrot.slane %v850, 2
      %v852 = vadd.f32 %v850, %v851
      %v853 = vrot.slane %v852, 1
      %v854 = vadd.f32 %v852, %v853
      %s855 = vtos %v854
      %s856 = smul.f32 %s855, 0.020833334
      %v857 = vpack.c.bf16 %v783, %v783
      %v858 = vpack.c.bf16 %v784, %v784
      %v859 = vpack.c.bf16 %v785, %v785
      %v860 = vpack.c.bf16 %v786, %v786
      %v861 = vpack.c.bf16 %v787, %v787
      %v862 = vpack.c.bf16 %v788, %v788
      %v863 = vpack.c.bf16 %v789, %v789
      %v864 = vpack.c.bf16 %v790, %v790
      %v865 = vld [vmem:[%s209] sm:$0xf]
      %v866 = vld [vmem:[%s209 + $0x4] sm:$0xf]
      %v867 = vld [vmem:[%s209 + $0x8] sm:$0xf]
      %v868 = vld [vmem:[%s209 + $0xc] sm:$0xf]
      %v869 = vld [vmem:[%s209 + $0x10] sm:$0xf]
      %v870 = vld [vmem:[%s209 + $0x14] sm:$0xf]
      %v871 = vld [vmem:[%s209 + $0x18] sm:$0xf]
      %v872 = vld [vmem:[%s209 + $0x1c] sm:$0xf]
      %v873 = vld [vmem:[%s209 + $0x20] sm:$0xf]
      %v874 = vld [vmem:[%s209 + $0x24] sm:$0xf]
      %v875 = vld [vmem:[%s209 + $0x28] sm:$0xf]
      %v876 = vld [vmem:[%s209 + $0x2c] sm:$0xf]
      %v877 = vld [vmem:[%s209 + $0x30] sm:$0xf]
      %v878 = vld [vmem:[%s209 + $0x34] sm:$0xf]
      %v879 = vld [vmem:[%s209 + $0x38] sm:$0xf]
      %v880 = vld [vmem:[%s209 + $0x3c] sm:$0xf]
      %v881 = vld [vmem:[%s209 + $0x40] sm:$0xf]
      %v882 = vld [vmem:[%s209 + $0x44] sm:$0xf]
      %v883 = vld [vmem:[%s209 + $0x48] sm:$0xf]
      %v884 = vld [vmem:[%s209 + $0x4c] sm:$0xf]
      %v885 = vld [vmem:[%s209 + $0x50] sm:$0xf]
      %v886 = vld [vmem:[%s209 + $0x54] sm:$0xf]
      %v887 = vld [vmem:[%s209 + $0x58] sm:$0xf]
      %v888 = vld [vmem:[%s209 + $0x5c] sm:$0xf]
      %v889 = vld [vmem:[%s209 + $0x60] sm:$0xf]
      %v890 = vld [vmem:[%s209 + $0x64] sm:$0xf]
      %v891 = vld [vmem:[%s209 + $0x68] sm:$0xf]
      %v892 = vld [vmem:[%s209 + $0x6c] sm:$0xf]
      %v893 = vld [vmem:[%s209 + $0x70] sm:$0xf]
      %v894 = vld [vmem:[%s209 + $0x74] sm:$0xf]
      %v895 = vld [vmem:[%s209 + $0x78] sm:$0xf]
      %v896 = vld [vmem:[%s209 + $0x7c] sm:$0xf]
      %v897 = vld [vmem:[%s209 + $0x80] sm:$0xf]
      %v898 = vld [vmem:[%s209 + $0x84] sm:$0xf]
      %v899 = vld [vmem:[%s209 + $0x88] sm:$0xf]
      %v900 = vld [vmem:[%s209 + $0x8c] sm:$0xf]
      %v901 = vld [vmem:[%s209 + $0x90] sm:$0xf]
      %v902 = vld [vmem:[%s209 + $0x94] sm:$0xf]
      %v903 = vld [vmem:[%s209 + $0x98] sm:$0xf]
      %v904 = vld [vmem:[%s209 + $0x9c] sm:$0xf]
      %v905 = vld [vmem:[%s209 + $0xa0] sm:$0xf]
      %v906 = vld [vmem:[%s209 + $0xa4] sm:$0xf]
      %v907 = vld [vmem:[%s209 + $0xa8] sm:$0xf]
      %v908 = vld [vmem:[%s209 + $0xac] sm:$0xf]
      %v909 = vld [vmem:[%s209 + $0xb0] sm:$0xf]
      %v910 = vld [vmem:[%s209 + $0xb4] sm:$0xf]
      %v911 = vld [vmem:[%s209 + $0xb8] sm:$0xf]
      %v912 = vld [vmem:[%s209 + $0xbc] sm:$0xf]
      %v913 = vld [vmem:[%s209 + $0xc0] sm:$0xf]
      %v914 = vld [vmem:[%s209 + $0xc4] sm:$0xf]
      %v915 = vld [vmem:[%s209 + $0xc8] sm:$0xf]
      %v916 = vld [vmem:[%s209 + $0xcc] sm:$0xf]
      %v917 = vld [vmem:[%s209 + $0xd0] sm:$0xf]
      %v918 = vld [vmem:[%s209 + $0xd4] sm:$0xf]
      %v919 = vld [vmem:[%s209 + $0xd8] sm:$0xf]
      %v920 = vld [vmem:[%s209 + $0xdc] sm:$0xf]
      %v921 = vld [vmem:[%s209 + $0xe0] sm:$0xf]
      %v922 = vld [vmem:[%s209 + $0xe4] sm:$0xf]
      %v923 = vld [vmem:[%s209 + $0xe8] sm:$0xf]
      %v924 = vld [vmem:[%s209 + $0xec] sm:$0xf]
      %v925 = vld [vmem:[%s209 + $0xf0] sm:$0xf]
      %v926 = vld [vmem:[%s209 + $0xf4] sm:$0xf]
      %v927 = vld [vmem:[%s209 + $0xf8] sm:$0xf]
      %v928 = vld [vmem:[%s209 + $0xfc] sm:$0xf]
      %v929 = vld [vmem:[%s209 + $0x100] sm:$0xf]
      %v930 = vld [vmem:[%s209 + $0x104] sm:$0xf]
      %v931 = vld [vmem:[%s209 + $0x108] sm:$0xf]
      %v932 = vld [vmem:[%s209 + $0x10c] sm:$0xf]
      %v933 = vld [vmem:[%s209 + $0x110] sm:$0xf]
      %v934 = vld [vmem:[%s209 + $0x114] sm:$0xf]
      %v935 = vld [vmem:[%s209 + $0x118] sm:$0xf]
      %v936 = vld [vmem:[%s209 + $0x11c] sm:$0xf]
      %v937 = vld [vmem:[%s209 + $0x120] sm:$0xf]
      %v938 = vld [vmem:[%s209 + $0x124] sm:$0xf]
      %v939 = vld [vmem:[%s209 + $0x128] sm:$0xf]
      %v940 = vld [vmem:[%s209 + $0x12c] sm:$0xf]
      %v941 = vld [vmem:[%s209 + $0x130] sm:$0xf]
      %v942 = vld [vmem:[%s209 + $0x134] sm:$0xf]
      %v943 = vld [vmem:[%s209 + $0x138] sm:$0xf]
      %v944 = vld [vmem:[%s209 + $0x13c] sm:$0xf]
      %v945 = vld [vmem:[%s209 + $0x140] sm:$0xf]
      %v946 = vld [vmem:[%s209 + $0x144] sm:$0xf]
      %v947 = vld [vmem:[%s209 + $0x148] sm:$0xf]
      %v948 = vld [vmem:[%s209 + $0x14c] sm:$0xf]
      %v949 = vld [vmem:[%s209 + $0x150] sm:$0xf]
      %v950 = vld [vmem:[%s209 + $0x154] sm:$0xf]
      %v951 = vld [vmem:[%s209 + $0x158] sm:$0xf]
      %v952 = vld [vmem:[%s209 + $0x15c] sm:$0xf]
      %v953 = vld [vmem:[%s209 + $0x160] sm:$0xf]
      %v954 = vld [vmem:[%s209 + $0x164] sm:$0xf]
      %v955 = vld [vmem:[%s209 + $0x168] sm:$0xf]
      %v956 = vld [vmem:[%s209 + $0x16c] sm:$0xf]
      %v957 = vld [vmem:[%s209 + $0x170] sm:$0xf]
      %v958 = vld [vmem:[%s209 + $0x174] sm:$0xf]
      %v959 = vld [vmem:[%s209 + $0x178] sm:$0xf]
      %v960 = vld [vmem:[%s209 + $0x17c] sm:$0xf]
      %v961 = vld [vmem:[%s209 + $0x180] sm:$0xf]
      %v962 = vld [vmem:[%s209 + $0x184] sm:$0xf]
      %v963 = vld [vmem:[%s209 + $0x188] sm:$0xf]
      %v964 = vld [vmem:[%s209 + $0x18c] sm:$0xf]
      %v965 = vld [vmem:[%s209 + $0x190] sm:$0xf]
      %v966 = vld [vmem:[%s209 + $0x194] sm:$0xf]
      %v967 = vld [vmem:[%s209 + $0x198] sm:$0xf]
      %v968 = vld [vmem:[%s209 + $0x19c] sm:$0xf]
      %v969 = vld [vmem:[%s209 + $0x1a0] sm:$0xf]
      %v970 = vld [vmem:[%s209 + $0x1a4] sm:$0xf]
      %v971 = vld [vmem:[%s209 + $0x1a8] sm:$0xf]
      %v972 = vld [vmem:[%s209 + $0x1ac] sm:$0xf]
      %v973 = vld [vmem:[%s209 + $0x1b0] sm:$0xf]
      %v974 = vld [vmem:[%s209 + $0x1b4] sm:$0xf]
      %v975 = vld [vmem:[%s209 + $0x1b8] sm:$0xf]
      %v976 = vld [vmem:[%s209 + $0x1bc] sm:$0xf]
      %v977 = vld [vmem:[%s209 + $0x1c0] sm:$0xf]
      %v978 = vld [vmem:[%s209 + $0x1c4] sm:$0xf]
      %v979 = vld [vmem:[%s209 + $0x1c8] sm:$0xf]
      %v980 = vld [vmem:[%s209 + $0x1cc] sm:$0xf]
      %v981 = vld [vmem:[%s209 + $0x1d0] sm:$0xf]
      %v982 = vld [vmem:[%s209 + $0x1d4] sm:$0xf]
      %v983 = vld [vmem:[%s209 + $0x1d8] sm:$0xf]
      %v984 = vld [vmem:[%s209 + $0x1dc] sm:$0xf]
      %v985 = vld [vmem:[%s209 + $0x1e0] sm:$0xf]
      %v986 = vld [vmem:[%s209 + $0x1e4] sm:$0xf]
      %v987 = vld [vmem:[%s209 + $0x1e8] sm:$0xf]
      %v988 = vld [vmem:[%s209 + $0x1ec] sm:$0xf]
      %v989 = vld [vmem:[%s209 + $0x1f0] sm:$0xf]
      %v990 = vld [vmem:[%s209 + $0x1f4] sm:$0xf]
      %v991 = vld [vmem:[%s209 + $0x1f8] sm:$0xf]
      %v992 = vld [vmem:[%s209 + $0x1fc] sm:$0xf]
      %v1121 = vunpack.c.l.b16 %v865
      %v1122 = vunpack.c.l.b16 %v866
      %v1123 = vunpack.c.l.b16 %v867
      %v1124 = vunpack.c.l.b16 %v868
      %v1125 = vunpack.c.l.b16 %v869
      %v1126 = vunpack.c.l.b16 %v870
      %v1127 = vunpack.c.l.b16 %v871
      %v1128 = vunpack.c.l.b16 %v872
      %v1129 = vunpack.c.l.b16 %v873
      %v1130 = vunpack.c.l.b16 %v874
      %v1131 = vunpack.c.l.b16 %v875
      %v1132 = vunpack.c.l.b16 %v876
      %v1133 = vunpack.c.l.b16 %v877
      %v1134 = vunpack.c.l.b16 %v878
      %v1135 = vunpack.c.l.b16 %v879
      %v1136 = vunpack.c.l.b16 %v880
      %v1137 = vunpack.c.l.b16 %v881
      %v1138 = vunpack.c.l.b16 %v882
      %v1139 = vunpack.c.l.b16 %v883
      %v1140 = vunpack.c.l.b16 %v884
      %v1141 = vunpack.c.l.b16 %v885
      %v1142 = vunpack.c.l.b16 %v886
      %v1143 = vunpack.c.l.b16 %v887
      %v1144 = vunpack.c.l.b16 %v888
      %v1145 = vunpack.c.l.b16 %v889
      %v1146 = vunpack.c.l.b16 %v890
      %v1147 = vunpack.c.l.b16 %v891
      %v1148 = vunpack.c.l.b16 %v892
      %v1149 = vunpack.c.l.b16 %v893
      %v1150 = vunpack.c.l.b16 %v894
      %v1151 = vunpack.c.l.b16 %v895
      %v1152 = vunpack.c.l.b16 %v896
      %v1153 = vunpack.c.l.b16 %v897
      %v1154 = vunpack.c.l.b16 %v898
      %v1155 = vunpack.c.l.b16 %v899
      %v1156 = vunpack.c.l.b16 %v900
      %v1157 = vunpack.c.l.b16 %v901
      %v1158 = vunpack.c.l.b16 %v902
      %v1159 = vunpack.c.l.b16 %v903
      %v1160 = vunpack.c.l.b16 %v904
      %v1161 = vunpack.c.l.b16 %v905
      %v1162 = vunpack.c.l.b16 %v906
      %v1163 = vunpack.c.l.b16 %v907
      %v1164 = vunpack.c.l.b16 %v908
      %v1165 = vunpack.c.l.b16 %v909
      %v1166 = vunpack.c.l.b16 %v910
      %v1167 = vunpack.c.l.b16 %v911
      %v1168 = vunpack.c.l.b16 %v912
      %v1169 = vunpack.c.l.b16 %v913
      %v1170 = vunpack.c.l.b16 %v914
      %v1171 = vunpack.c.l.b16 %v915
      %v1172 = vunpack.c.l.b16 %v916
      %v1173 = vunpack.c.l.b16 %v917
      %v1174 = vunpack.c.l.b16 %v918
      %v1175 = vunpack.c.l.b16 %v919
      %v1176 = vunpack.c.l.b16 %v920
      %v1177 = vunpack.c.l.b16 %v921
      %v1178 = vunpack.c.l.b16 %v922
      %v1179 = vunpack.c.l.b16 %v923
      %v1180 = vunpack.c.l.b16 %v924
      %v1181 = vunpack.c.l.b16 %v925
      %v1182 = vunpack.c.l.b16 %v926
      %v1183 = vunpack.c.l.b16 %v927
      %v1184 = vunpack.c.l.b16 %v928
      %v1185 = vunpack.c.l.b16 %v929
      %v1186 = vunpack.c.l.b16 %v930
      %v1187 = vunpack.c.l.b16 %v931
      %v1188 = vunpack.c.l.b16 %v932
      %v1189 = vunpack.c.l.b16 %v933
      %v1190 = vunpack.c.l.b16 %v934
      %v1191 = vunpack.c.l.b16 %v935
      %v1192 = vunpack.c.l.b16 %v936
      %v1193 = vunpack.c.l.b16 %v937
      %v1194 = vunpack.c.l.b16 %v938
      %v1195 = vunpack.c.l.b16 %v939
      %v1196 = vunpack.c.l.b16 %v940
      %v1197 = vunpack.c.l.b16 %v941
      %v1198 = vunpack.c.l.b16 %v942
      %v1199 = vunpack.c.l.b16 %v943
      %v1200 = vunpack.c.l.b16 %v944
      %v1201 = vunpack.c.l.b16 %v945
      %v1202 = vunpack.c.l.b16 %v946
      %v1203 = vunpack.c.l.b16 %v947
      %v1204 = vunpack.c.l.b16 %v948
      %v1205 = vunpack.c.l.b16 %v949
      %v1206 = vunpack.c.l.b16 %v950
      %v1207 = vunpack.c.l.b16 %v951
      %v1208 = vunpack.c.l.b16 %v952
      %v1209 = vunpack.c.l.b16 %v953
      %v1210 = vunpack.c.l.b16 %v954
      %v1211 = vunpack.c.l.b16 %v955
      %v1212 = vunpack.c.l.b16 %v956
      %v1213 = vunpack.c.l.b16 %v957
      %v1214 = vunpack.c.l.b16 %v958
      %v1215 = vunpack.c.l.b16 %v959
      %v1216 = vunpack.c.l.b16 %v960
      %v1217 = vunpack.c.l.b16 %v961
      %v1218 = vunpack.c.l.b16 %v962
      %v1219 = vunpack.c.l.b16 %v963
      %v1220 = vunpack.c.l.b16 %v964
      %v1221 = vunpack.c.l.b16 %v965
      %v1222 = vunpack.c.l.b16 %v966
      %v1223 = vunpack.c.l.b16 %v967
      %v1224 = vunpack.c.l.b16 %v968
      %v1225 = vunpack.c.l.b16 %v969
      %v1226 = vunpack.c.l.b16 %v970
      %v1227 = vunpack.c.l.b16 %v971
      %v1228 = vunpack.c.l.b16 %v972
      %v1229 = vunpack.c.l.b16 %v973
      %v1230 = vunpack.c.l.b16 %v974
      %v1231 = vunpack.c.l.b16 %v975
      %v1232 = vunpack.c.l.b16 %v976
      %v1233 = vunpack.c.l.b16 %v977
      %v1234 = vunpack.c.l.b16 %v978
      %v1235 = vunpack.c.l.b16 %v979
      %v1236 = vunpack.c.l.b16 %v980
      %v1237 = vunpack.c.l.b16 %v981
      %v1238 = vunpack.c.l.b16 %v982
      %v1239 = vunpack.c.l.b16 %v983
      %v1240 = vunpack.c.l.b16 %v984
      %v1241 = vunpack.c.l.b16 %v985
      %v1242 = vunpack.c.l.b16 %v986
      %v1243 = vunpack.c.l.b16 %v987
      %v1244 = vunpack.c.l.b16 %v988
      %v1245 = vunpack.c.l.b16 %v989
      %v1246 = vunpack.c.l.b16 %v990
      %v1247 = vunpack.c.l.b16 %v991
      %v1248 = vunpack.c.l.b16 %v992
      %v1249 = vpack.c.b16 %v1122, %v1121
      %v1250 = vpack.c.b16 %v1124, %v1123
      %v1251 = vpack.c.b16 %v1126, %v1125
      %v1252 = vpack.c.b16 %v1128, %v1127
      %v1253 = vpack.c.b16 %v1130, %v1129
      %v1254 = vpack.c.b16 %v1132, %v1131
      %v1255 = vpack.c.b16 %v1134, %v1133
      %v1256 = vpack.c.b16 %v1136, %v1135
      %v1257 = vpack.c.b16 %v1138, %v1137
      %v1258 = vpack.c.b16 %v1140, %v1139
      %v1259 = vpack.c.b16 %v1142, %v1141
      %v1260 = vpack.c.b16 %v1144, %v1143
      %v1261 = vpack.c.b16 %v1146, %v1145
      %v1262 = vpack.c.b16 %v1148, %v1147
      %v1263 = vpack.c.b16 %v1150, %v1149
      %v1264 = vpack.c.b16 %v1152, %v1151
      %v1265 = vpack.c.b16 %v1154, %v1153
      %v1266 = vpack.c.b16 %v1156, %v1155
      %v1267 = vpack.c.b16 %v1158, %v1157
      %v1268 = vpack.c.b16 %v1160, %v1159
      %v1269 = vpack.c.b16 %v1162, %v1161
      %v1270 = vpack.c.b16 %v1164, %v1163
      %v1271 = vpack.c.b16 %v1166, %v1165
      %v1272 = vpack.c.b16 %v1168, %v1167
      %v1273 = vpack.c.b16 %v1170, %v1169
      %v1274 = vpack.c.b16 %v1172, %v1171
      %v1275 = vpack.c.b16 %v1174, %v1173
      %v1276 = vpack.c.b16 %v1176, %v1175
      %v1277 = vpack.c.b16 %v1178, %v1177
      %v1278 = vpack.c.b16 %v1180, %v1179
      %v1279 = vpack.c.b16 %v1182, %v1181
      %v1280 = vpack.c.b16 %v1184, %v1183
      %v1281 = vpack.c.b16 %v1186, %v1185
      %v1282 = vpack.c.b16 %v1188, %v1187
      %v1283 = vpack.c.b16 %v1190, %v1189
      %v1284 = vpack.c.b16 %v1192, %v1191
      %v1285 = vpack.c.b16 %v1194, %v1193
      %v1286 = vpack.c.b16 %v1196, %v1195
      %v1287 = vpack.c.b16 %v1198, %v1197
      %v1288 = vpack.c.b16 %v1200, %v1199
      %v1289 = vpack.c.b16 %v1202, %v1201
      %v1290 = vpack.c.b16 %v1204, %v1203
      %v1291 = vpack.c.b16 %v1206, %v1205
      %v1292 = vpack.c.b16 %v1208, %v1207
      %v1293 = vpack.c.b16 %v1210, %v1209
      %v1294 = vpack.c.b16 %v1212, %v1211
      %v1295 = vpack.c.b16 %v1214, %v1213
      %v1296 = vpack.c.b16 %v1216, %v1215
      %v1297 = vpack.c.b16 %v1218, %v1217
      %v1298 = vpack.c.b16 %v1220, %v1219
      %v1299 = vpack.c.b16 %v1222, %v1221
      %v1300 = vpack.c.b16 %v1224, %v1223
      %v1301 = vpack.c.b16 %v1226, %v1225
      %v1302 = vpack.c.b16 %v1228, %v1227
      %v1303 = vpack.c.b16 %v1230, %v1229
      %v1304 = vpack.c.b16 %v1232, %v1231
      %v1305 = vpack.c.b16 %v1234, %v1233
      %v1306 = vpack.c.b16 %v1236, %v1235
      %v1307 = vpack.c.b16 %v1238, %v1237
      %v1308 = vpack.c.b16 %v1240, %v1239
      %v1309 = vpack.c.b16 %v1242, %v1241
      %v1310 = vpack.c.b16 %v1244, %v1243
      %v1311 = vpack.c.b16 %v1246, %v1245
      %v1312 = vpack.c.b16 %v1248, %v1247
      %1377 = vmatprep.subr.bf16.mxu0 0
      %1378 = vmatpush1.bf16.msra.mxu0 %v1249
      %1379 = vmatprep.subr.bf16.mxu0 0
      %1380 = vmatpush1.bf16.msra.mxu0 %v1250
      %1381 = vmatprep.subr.bf16.mxu0 0
      %1382 = vmatpush1.bf16.msra.mxu0 %v1251
      %1383 = vmatprep.subr.bf16.mxu0 0
      %1384 = vmatpush1.bf16.msra.mxu0 %v1252
      %1385 = vmatprep.subr.bf16.mxu0 0
      %1386 = vmatpush1.bf16.msra.mxu0 %v1253
      %1387 = vmatprep.subr.bf16.mxu0 0
      %1388 = vmatpush1.bf16.msra.mxu0 %v1254
      %1389 = vmatprep.subr.bf16.mxu0 0
      %1390 = vmatpush1.bf16.msra.mxu0 %v1255
      %1391 = vmatprep.subr.bf16.mxu0 0
      %1392 = vmatpush1.bf16.msra.mxu0 %v1256
      %1393 = vmatprep.subr.bf16.mxu0 0
      %1394 = vmatpush1.bf16.msra.mxu0 %v1257
      %1395 = vmatprep.subr.bf16.mxu0 0
      %1396 = vmatpush1.bf16.msra.mxu0 %v1258
      %1397 = vmatprep.subr.bf16.mxu0 0
      %1398 = vmatpush1.bf16.msra.mxu0 %v1259
      %1399 = vmatprep.subr.bf16.mxu0 0
      %1400 = vmatpush1.bf16.msra.mxu0 %v1260
      %1401 = vmatprep.subr.bf16.mxu0 0
      %1402 = vmatpush1.bf16.msra.mxu0 %v1261
      %1403 = vmatprep.subr.bf16.mxu0 0
      %1404 = vmatpush1.bf16.msra.mxu0 %v1262
      %1405 = vmatprep.subr.bf16.mxu0 0
      %1406 = vmatpush1.bf16.msra.mxu0 %v1263
      %1407 = vmatprep.subr.bf16.mxu0 0
      %1408 = vmatpush1.bf16.msra.mxu0 %v1264
      %1409 = vmatprep.mubr.bf16.mxu0 %v858
      %1410 = vmatmul.mubr.bf16.gmra.mrb[0].mxu0 %v857
      %v1411 = vpop.f32.mrb[0].mxu0
      %v1412 = vadd.f32 0.0, %v1411
      %v1413 = vpop.f32.mrb[0].mxu0
      %v1414 = vpop.f32.mrb[0].mxu0
      %v1415 = vpop.f32.mrb[0].mxu0
      %1416 = vdwg.mxu0
      %1417 = vmatprep.subr.bf16.mxu0 0
      %1418 = vmatpush1.bf16.msra.mxu0 %v1265
      %1419 = vmatprep.subr.bf16.mxu0 0
      %1420 = vmatpush1.bf16.msra.mxu0 %v1266
      %1421 = vmatprep.subr.bf16.mxu0 0
      %1422 = vmatpush1.bf16.msra.mxu0 %v1267
      %1423 = vmatprep.subr.bf16.mxu0 0
      %1424 = vmatpush1.bf16.msra.mxu0 %v1268
      %1425 = vmatprep.subr.bf16.mxu0 0
      %1426 = vmatpush1.bf16.msra.mxu0 %v1269
      %1427 = vmatprep.subr.bf16.mxu0 0
      %1428 = vmatpush1.bf16.msra.mxu0 %v1270
      %1429 = vmatprep.subr.bf16.mxu0 0
      %1430 = vmatpush1.bf16.msra.mxu0 %v1271
      %1431 = vmatprep.subr.bf16.mxu0 0
      %1432 = vmatpush1.bf16.msra.mxu0 %v1272
      %1433 = vmatprep.subr.bf16.mxu0 0
      %1434 = vmatpush1.bf16.msra.mxu0 %v1273
      %1435 = vmatprep.subr.bf16.mxu0 0
      %1436 = vmatpush1.bf16.msra.mxu0 %v1274
      %1437 = vmatprep.subr.bf16.mxu0 0
      %1438 = vmatpush1.bf16.msra.mxu0 %v1275
      %1439 = vmatprep.subr.bf16.mxu0 0
      %1440 = vmatpush1.bf16.msra.mxu0 %v1276
      %1441 = vmatprep.subr.bf16.mxu0 0
      %1442 = vmatpush1.bf16.msra.mxu0 %v1277
      %1443 = vmatprep.subr.bf16.mxu0 0
      %1444 = vmatpush1.bf16.msra.mxu0 %v1278
      %1445 = vmatprep.subr.bf16.mxu0 0
      %1446 = vmatpush1.bf16.msra.mxu0 %v1279
      %1447 = vmatprep.subr.bf16.mxu0 0
      %1448 = vmatpush1.bf16.msra.mxu0 %v1280
      %1449 = vmatprep.mubr.bf16.mxu0 %v860
      %1450 = vmatmul.mubr.bf16.gmra.mrb[0].mxu0 %v859
      %v1451 = vpop.f32.mrb[0].mxu0
      %v1452 = vadd.f32 %v1412, %v1451
      %v1453 = vpop.f32.mrb[0].mxu0
      %v1454 = vpop.f32.mrb[0].mxu0
      %v1455 = vpop.f32.mrb[0].mxu0
      %1456 = vdwg.mxu0
      %1457 = vmatprep.subr.bf16.mxu0 0
      %1458 = vmatpush1.bf16.msra.mxu0 %v1281
      %1459 = vmatprep.subr.bf16.mxu0 0
      %1460 = vmatpush1.bf16.msra.mxu0 %v1282
      %1461 = vmatprep.subr.bf16.mxu0 0
      %1462 = vmatpush1.bf16.msra.mxu0 %v1283
      %1463 = vmatprep.subr.bf16.mxu0 0
      %1464 = vmatpush1.bf16.msra.mxu0 %v1284
      %1465 = vmatprep.subr.bf16.mxu0 0
      %1466 = vmatpush1.bf16.msra.mxu0 %v1285
      %1467 = vmatprep.subr.bf16.mxu0 0
      %1468 = vmatpush1.bf16.msra.mxu0 %v1286
      %1469 = vmatprep.subr.bf16.mxu0 0
      %1470 = vmatpush1.bf16.msra.mxu0 %v1287
      %1471 = vmatprep.subr.bf16.mxu0 0
      %1472 = vmatpush1.bf16.msra.mxu0 %v1288
      %1473 = vmatprep.subr.bf16.mxu0 0
      %1474 = vmatpush1.bf16.msra.mxu0 %v1289
      %1475 = vmatprep.subr.bf16.mxu0 0
      %1476 = vmatpush1.bf16.msra.mxu0 %v1290
      %1477 = vmatprep.subr.bf16.mxu0 0
      %1478 = vmatpush1.bf16.msra.mxu0 %v1291
      %1479 = vmatprep.subr.bf16.mxu0 0
      %1480 = vmatpush1.bf16.msra.mxu0 %v1292
      %1481 = vmatprep.subr.bf16.mxu0 0
      %1482 = vmatpush1.bf16.msra.mxu0 %v1293
      %1483 = vmatprep.subr.bf16.mxu0 0
      %1484 = vmatpush1.bf16.msra.mxu0 %v1294
      %1485 = vmatprep.subr.bf16.mxu0 0
      %1486 = vmatpush1.bf16.msra.mxu0 %v1295
      %1487 = vmatprep.subr.bf16.mxu0 0
      %1488 = vmatpush1.bf16.msra.mxu0 %v1296
      %1489 = vmatprep.mubr.bf16.mxu0 %v862
      %1490 = vmatmul.mubr.bf16.gmra.mrb[0].mxu0 %v861
      %v1491 = vpop.f32.mrb[0].mxu0
      %v1492 = vadd.f32 %v1452, %v1491
      %v1493 = vpop.f32.mrb[0].mxu0
      %v1494 = vpop.f32.mrb[0].mxu0
      %v1495 = vpop.f32.mrb[0].mxu0
      %1496 = vdwg.mxu0
      %1497 = vmatprep.subr.bf16.mxu0 0
      %1498 = vmatpush1.bf16.msra.mxu0 %v1297
      %1499 = vmatprep.subr.bf16.mxu0 0
      %1500 = vmatpush1.bf16.msra.mxu0 %v1298
      %1501 = vmatprep.subr.bf16.mxu0 0
      %1502 = vmatpush1.bf16.msra.mxu0 %v1299
      %1503 = vmatprep.subr.bf16.mxu0 0
      %1504 = vmatpush1.bf16.msra.mxu0 %v1300
      %1505 = vmatprep.subr.bf16.mxu0 0
      %1506 = vmatpush1.bf16.msra.mxu0 %v1301
      %1507 = vmatprep.subr.bf16.mxu0 0
      %1508 = vmatpush1.bf16.msra.mxu0 %v1302
      %1509 = vmatprep.subr.bf16.mxu0 0
      %1510 = vmatpush1.bf16.msra.mxu0 %v1303
      %1511 = vmatprep.subr.bf16.mxu0 0
      %1512 = vmatpush1.bf16.msra.mxu0 %v1304
      %1513 = vmatprep.subr.bf16.mxu0 0
      %1514 = vmatpush1.bf16.msra.mxu0 %v1305
      %1515 = vmatprep.subr.bf16.mxu0 0
      %1516 = vmatpush1.bf16.msra.mxu0 %v1306
      %1517 = vmatprep.subr.bf16.mxu0 0
      %1518 = vmatpush1.bf16.msra.mxu0 %v1307
      %1519 = vmatprep.subr.bf16.mxu0 0
      %1520 = vmatpush1.bf16.msra.mxu0 %v1308
      %1521 = vmatprep.subr.bf16.mxu0 0
      %1522 = vmatpush1.bf16.msra.mxu0 %v1309
      %1523 = vmatprep.subr.bf16.mxu0 0
      %1524 = vmatpush1.bf16.msra.mxu0 %v1310
      %1525 = vmatprep.subr.bf16.mxu0 0
      %1526 = vmatpush1.bf16.msra.mxu0 %v1311
      %1527 = vmatprep.subr.bf16.mxu0 0
      %1528 = vmatpush1.bf16.msra.mxu0 %v1312
      %1529 = vmatprep.mubr.bf16.mxu0 %v864
      %1530 = vmatmul.mubr.bf16.gmra.mrb[0].mxu0 %v863
      %v1531 = vpop.f32.mrb[0].mxu0
      %v1532 = vadd.f32 %v1492, %v1531
      %v1533 = vpop.f32.mrb[0].mxu0
      %v1534 = vpop.f32.mrb[0].mxu0
      %v1535 = vpop.f32.mrb[0].mxu0
      %1536 = vdwg.mxu0
      %v1537 = vlaneseq
      %v1538 = vand.u32 %v1537, 127
      %vm1539 = vcmp.lt.s32.totalorder %v1538, 48
      %v1540 = vstv %s843
      %v1541 = vstv %s856
      %v1542 = vsel %vm1539, %v1540, %v1541
      %v1543 = vsub.f32 %v232, %v1532
      %v1544 = vmul.f32 %v1542, %v233
      %v1545 = vadd.f32 %v1543, %v1544
      %1546 = vst.msk [vmem:[#allocation2] sm:$0xff] %vm235, %v1545
      %1547 = vst [vmem:[#allocation3] sm:$0xff] %v783
      %1548 = vst [vmem:[#allocation3 + $0x8] sm:$0xff] %v784
      %1549 = vst [vmem:[#allocation3 + $0x10] sm:$0xff] %v785
      %1550 = vst [vmem:[#allocation3 + $0x18] sm:$0xff] %v786
      %1551 = vst [vmem:[#allocation3 + $0x20] sm:$0xff] %v787
      %1552 = vst [vmem:[#allocation3 + $0x28] sm:$0xff] %v788
      %1553 = vst [vmem:[#allocation3 + $0x30] sm:$0xff] %v789
      %1554 = vst [vmem:[#allocation3 + $0x38] sm:$0xff] %v790
      %p1555 = scmp.eq.s32.totalorder %s22, 3
      // Predicated region
      $region41: #{lamp_forward.1} parent=35 // pred_check
        %p1556 = pneg %p1555
      $region42: #{lamp_forward.1} parent=35 // pred_check_branch
        %1558 = sbr.rel (%p1556) target = $region44
      $region43: #{lamp_forward.1} parent=35 // pred_region
        %v1559 = vld [vmem:[%s4] sm:$0xf]
        %v1560 = vld [vmem:[%s4 + $0x4] sm:$0xf]
        %v1561 = vld [vmem:[%s4 + $0x8] sm:$0xf]
        %v1562 = vld [vmem:[%s4 + $0xc] sm:$0xf]
        %v1563 = vld [vmem:[%s4 + $0x10] sm:$0xf]
        %v1564 = vld [vmem:[%s4 + $0x14] sm:$0xf]
        %v1565 = vld [vmem:[%s4 + $0x18] sm:$0xf]
        %v1566 = vld [vmem:[%s4 + $0x1c] sm:$0xf]
        %v1567 = vld [vmem:[%s4 + $0x20] sm:$0xf]
        %v1568 = vld [vmem:[%s4 + $0x24] sm:$0xf]
        %v1569 = vld [vmem:[%s4 + $0x28] sm:$0xf]
        %v1570 = vld [vmem:[%s4 + $0x2c] sm:$0xf]
        %v1571 = vld [vmem:[%s4 + $0x30] sm:$0xf]
        %v1572 = vld [vmem:[%s4 + $0x34] sm:$0xf]
        %v1573 = vld [vmem:[%s4 + $0x38] sm:$0xf]
        %v1574 = vld [vmem:[%s4 + $0x3c] sm:$0xf]
        %v1575 = vld [vmem:[%s4 + $0x40] sm:$0xf]
        %v1576 = vld [vmem:[%s4 + $0x44] sm:$0xf]
        %v1577 = vld [vmem:[%s4 + $0x48] sm:$0xf]
        %v1578 = vld [vmem:[%s4 + $0x4c] sm:$0xf]
        %v1579 = vld [vmem:[%s4 + $0x50] sm:$0xf]
        %v1580 = vld [vmem:[%s4 + $0x54] sm:$0xf]
        %v1581 = vld [vmem:[%s4 + $0x58] sm:$0xf]
        %v1582 = vld [vmem:[%s4 + $0x5c] sm:$0xf]
        %v1583 = vld [vmem:[%s4 + $0x60] sm:$0xf]
        %v1584 = vld [vmem:[%s4 + $0x64] sm:$0xf]
        %v1585 = vld [vmem:[%s4 + $0x68] sm:$0xf]
        %v1586 = vld [vmem:[%s4 + $0x6c] sm:$0xf]
        %v1587 = vld [vmem:[%s4 + $0x70] sm:$0xf]
        %v1588 = vld [vmem:[%s4 + $0x74] sm:$0xf]
        %v1589 = vld [vmem:[%s4 + $0x78] sm:$0xf]
        %v1590 = vld [vmem:[%s4 + $0x7c] sm:$0xf]
        %v1591 = vld [vmem:[%s4 + $0x80] sm:$0xf]
        %v1592 = vld [vmem:[%s4 + $0x84] sm:$0xf]
        %v1593 = vld [vmem:[%s4 + $0x88] sm:$0xf]
        %v1594 = vld [vmem:[%s4 + $0x8c] sm:$0xf]
        %v1595 = vld [vmem:[%s4 + $0x90] sm:$0xf]
        %v1596 = vld [vmem:[%s4 + $0x94] sm:$0xf]
        %v1597 = vld [vmem:[%s4 + $0x98] sm:$0xf]
        %v1598 = vld [vmem:[%s4 + $0x9c] sm:$0xf]
        %v1599 = vld [vmem:[%s4 + $0xa0] sm:$0xf]
        %v1600 = vld [vmem:[%s4 + $0xa4] sm:$0xf]
        %v1601 = vld [vmem:[%s4 + $0xa8] sm:$0xf]
        %v1602 = vld [vmem:[%s4 + $0xac] sm:$0xf]
        %v1603 = vld [vmem:[%s4 + $0xb0] sm:$0xf]
        %v1604 = vld [vmem:[%s4 + $0xb4] sm:$0xf]
        %v1605 = vld [vmem:[%s4 + $0xb8] sm:$0xf]
        %v1606 = vld [vmem:[%s4 + $0xbc] sm:$0xf]
        %v1607 = vld [vmem:[%s4 + $0xc0] sm:$0xf]
        %v1608 = vld [vmem:[%s4 + $0xc4] sm:$0xf]
        %v1609 = vld [vmem:[%s4 + $0xc8] sm:$0xf]
        %v1610 = vld [vmem:[%s4 + $0xcc] sm:$0xf]
        %v1611 = vld [vmem:[%s4 + $0xd0] sm:$0xf]
        %v1612 = vld [vmem:[%s4 + $0xd4] sm:$0xf]
        %v1613 = vld [vmem:[%s4 + $0xd8] sm:$0xf]
        %v1614 = vld [vmem:[%s4 + $0xdc] sm:$0xf]
        %v1615 = vld [vmem:[%s4 + $0xe0] sm:$0xf]
        %v1616 = vld [vmem:[%s4 + $0xe4] sm:$0xf]
        %v1617 = vld [vmem:[%s4 + $0xe8] sm:$0xf]
        %v1618 = vld [vmem:[%s4 + $0xec] sm:$0xf]
        %v1619 = vld [vmem:[%s4 + $0xf0] sm:$0xf]
        %v1620 = vld [vmem:[%s4 + $0xf4] sm:$0xf]
        %v1621 = vld [vmem:[%s4 + $0xf8] sm:$0xf]
        %v1622 = vld [vmem:[%s4 + $0xfc] sm:$0xf]
        %v1623 = vld [vmem:[%s4 + $0x100] sm:$0xf]
        %v1624 = vld [vmem:[%s4 + $0x104] sm:$0xf]
        %v1625 = vld [vmem:[%s4 + $0x108] sm:$0xf]
        %v1626 = vld [vmem:[%s4 + $0x10c] sm:$0xf]
        %v1627 = vld [vmem:[%s4 + $0x110] sm:$0xf]
        %v1628 = vld [vmem:[%s4 + $0x114] sm:$0xf]
        %v1629 = vld [vmem:[%s4 + $0x118] sm:$0xf]
        %v1630 = vld [vmem:[%s4 + $0x11c] sm:$0xf]
        %v1631 = vld [vmem:[%s4 + $0x120] sm:$0xf]
        %v1632 = vld [vmem:[%s4 + $0x124] sm:$0xf]
        %v1633 = vld [vmem:[%s4 + $0x128] sm:$0xf]
        %v1634 = vld [vmem:[%s4 + $0x12c] sm:$0xf]
        %v1635 = vld [vmem:[%s4 + $0x130] sm:$0xf]
        %v1636 = vld [vmem:[%s4 + $0x134] sm:$0xf]
        %v1637 = vld [vmem:[%s4 + $0x138] sm:$0xf]
        %v1638 = vld [vmem:[%s4 + $0x13c] sm:$0xf]
        %v1639 = vld [vmem:[%s4 + $0x140] sm:$0xf]
        %v1640 = vld [vmem:[%s4 + $0x144] sm:$0xf]
        %v1641 = vld [vmem:[%s4 + $0x148] sm:$0xf]
        %v1642 = vld [vmem:[%s4 + $0x14c] sm:$0xf]
        %v1643 = vld [vmem:[%s4 + $0x150] sm:$0xf]
        %v1644 = vld [vmem:[%s4 + $0x154] sm:$0xf]
        %v1645 = vld [vmem:[%s4 + $0x158] sm:$0xf]
        %v1646 = vld [vmem:[%s4 + $0x15c] sm:$0xf]
        %v1647 = vld [vmem:[%s4 + $0x160] sm:$0xf]
        %v1648 = vld [vmem:[%s4 + $0x164] sm:$0xf]
        %v1649 = vld [vmem:[%s4 + $0x168] sm:$0xf]
        %v1650 = vld [vmem:[%s4 + $0x16c] sm:$0xf]
        %v1651 = vld [vmem:[%s4 + $0x170] sm:$0xf]
        %v1652 = vld [vmem:[%s4 + $0x174] sm:$0xf]
        %v1653 = vld [vmem:[%s4 + $0x178] sm:$0xf]
        %v1654 = vld [vmem:[%s4 + $0x17c] sm:$0xf]
        %v1655 = vld [vmem:[%s4 + $0x180] sm:$0xf]
        %v1656 = vld [vmem:[%s4 + $0x184] sm:$0xf]
        %v1657 = vld [vmem:[%s4 + $0x188] sm:$0xf]
        %v1658 = vld [vmem:[%s4 + $0x18c] sm:$0xf]
        %v1659 = vld [vmem:[%s4 + $0x190] sm:$0xf]
        %v1660 = vld [vmem:[%s4 + $0x194] sm:$0xf]
        %v1661 = vld [vmem:[%s4 + $0x198] sm:$0xf]
        %v1662 = vld [vmem:[%s4 + $0x19c] sm:$0xf]
        %v1663 = vld [vmem:[%s4 + $0x1a0] sm:$0xf]
        %v1664 = vld [vmem:[%s4 + $0x1a4] sm:$0xf]
        %v1665 = vld [vmem:[%s4 + $0x1a8] sm:$0xf]
        %v1666 = vld [vmem:[%s4 + $0x1ac] sm:$0xf]
        %v1667 = vld [vmem:[%s4 + $0x1b0] sm:$0xf]
        %v1668 = vld [vmem:[%s4 + $0x1b4] sm:$0xf]
        %v1669 = vld [vmem:[%s4 + $0x1b8] sm:$0xf]
        %v1670 = vld [vmem:[%s4 + $0x1bc] sm:$0xf]
        %v1671 = vld [vmem:[%s4 + $0x1c0] sm:$0xf]
        %v1672 = vld [vmem:[%s4 + $0x1c4] sm:$0xf]
        %v1673 = vld [vmem:[%s4 + $0x1c8] sm:$0xf]
        %v1674 = vld [vmem:[%s4 + $0x1cc] sm:$0xf]
        %v1675 = vld [vmem:[%s4 + $0x1d0] sm:$0xf]
        %v1676 = vld [vmem:[%s4 + $0x1d4] sm:$0xf]
        %v1677 = vld [vmem:[%s4 + $0x1d8] sm:$0xf]
        %v1678 = vld [vmem:[%s4 + $0x1dc] sm:$0xf]
        %v1679 = vld [vmem:[%s4 + $0x1e0] sm:$0xf]
        %v1680 = vld [vmem:[%s4 + $0x1e4] sm:$0xf]
        %v1681 = vld [vmem:[%s4 + $0x1e8] sm:$0xf]
        %v1682 = vld [vmem:[%s4 + $0x1ec] sm:$0xf]
        %v1683 = vld [vmem:[%s4 + $0x1f0] sm:$0xf]
        %v1684 = vld [vmem:[%s4 + $0x1f4] sm:$0xf]
        %v1685 = vld [vmem:[%s4 + $0x1f8] sm:$0xf]
        %v1686 = vld [vmem:[%s4 + $0x1fc] sm:$0xf]
        %v1815 = vunpack.c.l.b16 %v1559
        %v1816 = vunpack.c.l.b16 %v1560
        %v1817 = vunpack.c.l.b16 %v1561
        %v1818 = vunpack.c.l.b16 %v1562
        %v1819 = vunpack.c.l.b16 %v1563
        %v1820 = vunpack.c.l.b16 %v1564
        %v1821 = vunpack.c.l.b16 %v1565
        %v1822 = vunpack.c.l.b16 %v1566
        %v1823 = vunpack.c.l.b16 %v1567
        %v1824 = vunpack.c.l.b16 %v1568
        %v1825 = vunpack.c.l.b16 %v1569
        %v1826 = vunpack.c.l.b16 %v1570
        %v1827 = vunpack.c.l.b16 %v1571
        %v1828 = vunpack.c.l.b16 %v1572
        %v1829 = vunpack.c.l.b16 %v1573
        %v1830 = vunpack.c.l.b16 %v1574
        %v1831 = vunpack.c.l.b16 %v1575
        %v1832 = vunpack.c.l.b16 %v1576
        %v1833 = vunpack.c.l.b16 %v1577
        %v1834 = vunpack.c.l.b16 %v1578
        %v1835 = vunpack.c.l.b16 %v1579
        %v1836 = vunpack.c.l.b16 %v1580
        %v1837 = vunpack.c.l.b16 %v1581
        %v1838 = vunpack.c.l.b16 %v1582
        %v1839 = vunpack.c.l.b16 %v1583
        %v1840 = vunpack.c.l.b16 %v1584
        %v1841 = vunpack.c.l.b16 %v1585
        %v1842 = vunpack.c.l.b16 %v1586
        %v1843 = vunpack.c.l.b16 %v1587
        %v1844 = vunpack.c.l.b16 %v1588
        %v1845 = vunpack.c.l.b16 %v1589
        %v1846 = vunpack.c.l.b16 %v1590
        %v1847 = vunpack.c.l.b16 %v1591
        %v1848 = vunpack.c.l.b16 %v1592
        %v1849 = vunpack.c.l.b16 %v1593
        %v1850 = vunpack.c.l.b16 %v1594
        %v1851 = vunpack.c.l.b16 %v1595
        %v1852 = vunpack.c.l.b16 %v1596
        %v1853 = vunpack.c.l.b16 %v1597
        %v1854 = vunpack.c.l.b16 %v1598
        %v1855 = vunpack.c.l.b16 %v1599
        %v1856 = vunpack.c.l.b16 %v1600
        %v1857 = vunpack.c.l.b16 %v1601
        %v1858 = vunpack.c.l.b16 %v1602
        %v1859 = vunpack.c.l.b16 %v1603
        %v1860 = vunpack.c.l.b16 %v1604
        %v1861 = vunpack.c.l.b16 %v1605
        %v1862 = vunpack.c.l.b16 %v1606
        %v1863 = vunpack.c.l.b16 %v1607
        %v1864 = vunpack.c.l.b16 %v1608
        %v1865 = vunpack.c.l.b16 %v1609
        %v1866 = vunpack.c.l.b16 %v1610
        %v1867 = vunpack.c.l.b16 %v1611
        %v1868 = vunpack.c.l.b16 %v1612
        %v1869 = vunpack.c.l.b16 %v1613
        %v1870 = vunpack.c.l.b16 %v1614
        %v1871 = vunpack.c.l.b16 %v1615
        %v1872 = vunpack.c.l.b16 %v1616
        %v1873 = vunpack.c.l.b16 %v1617
        %v1874 = vunpack.c.l.b16 %v1618
        %v1875 = vunpack.c.l.b16 %v1619
        %v1876 = vunpack.c.l.b16 %v1620
        %v1877 = vunpack.c.l.b16 %v1621
        %v1878 = vunpack.c.l.b16 %v1622
        %v1879 = vunpack.c.l.b16 %v1623
        %v1880 = vunpack.c.l.b16 %v1624
        %v1881 = vunpack.c.l.b16 %v1625
        %v1882 = vunpack.c.l.b16 %v1626
        %v1883 = vunpack.c.l.b16 %v1627
        %v1884 = vunpack.c.l.b16 %v1628
        %v1885 = vunpack.c.l.b16 %v1629
        %v1886 = vunpack.c.l.b16 %v1630
        %v1887 = vunpack.c.l.b16 %v1631
        %v1888 = vunpack.c.l.b16 %v1632
        %v1889 = vunpack.c.l.b16 %v1633
        %v1890 = vunpack.c.l.b16 %v1634
        %v1891 = vunpack.c.l.b16 %v1635
        %v1892 = vunpack.c.l.b16 %v1636
        %v1893 = vunpack.c.l.b16 %v1637
        %v1894 = vunpack.c.l.b16 %v1638
        %v1895 = vunpack.c.l.b16 %v1639
        %v1896 = vunpack.c.l.b16 %v1640
        %v1897 = vunpack.c.l.b16 %v1641
        %v1898 = vunpack.c.l.b16 %v1642
        %v1899 = vunpack.c.l.b16 %v1643
        %v1900 = vunpack.c.l.b16 %v1644
        %v1901 = vunpack.c.l.b16 %v1645
        %v1902 = vunpack.c.l.b16 %v1646
        %v1903 = vunpack.c.l.b16 %v1647
        %v1904 = vunpack.c.l.b16 %v1648
        %v1905 = vunpack.c.l.b16 %v1649
        %v1906 = vunpack.c.l.b16 %v1650
        %v1907 = vunpack.c.l.b16 %v1651
        %v1908 = vunpack.c.l.b16 %v1652
        %v1909 = vunpack.c.l.b16 %v1653
        %v1910 = vunpack.c.l.b16 %v1654
        %v1911 = vunpack.c.l.b16 %v1655
        %v1912 = vunpack.c.l.b16 %v1656
        %v1913 = vunpack.c.l.b16 %v1657
        %v1914 = vunpack.c.l.b16 %v1658
        %v1915 = vunpack.c.l.b16 %v1659
        %v1916 = vunpack.c.l.b16 %v1660
        %v1917 = vunpack.c.l.b16 %v1661
        %v1918 = vunpack.c.l.b16 %v1662
        %v1919 = vunpack.c.l.b16 %v1663
        %v1920 = vunpack.c.l.b16 %v1664
        %v1921 = vunpack.c.l.b16 %v1665
        %v1922 = vunpack.c.l.b16 %v1666
        %v1923 = vunpack.c.l.b16 %v1667
        %v1924 = vunpack.c.l.b16 %v1668
        %v1925 = vunpack.c.l.b16 %v1669
        %v1926 = vunpack.c.l.b16 %v1670
        %v1927 = vunpack.c.l.b16 %v1671
        %v1928 = vunpack.c.l.b16 %v1672
        %v1929 = vunpack.c.l.b16 %v1673
        %v1930 = vunpack.c.l.b16 %v1674
        %v1931 = vunpack.c.l.b16 %v1675
        %v1932 = vunpack.c.l.b16 %v1676
        %v1933 = vunpack.c.l.b16 %v1677
        %v1934 = vunpack.c.l.b16 %v1678
        %v1935 = vunpack.c.l.b16 %v1679
        %v1936 = vunpack.c.l.b16 %v1680
        %v1937 = vunpack.c.l.b16 %v1681
        %v1938 = vunpack.c.l.b16 %v1682
        %v1939 = vunpack.c.l.b16 %v1683
        %v1940 = vunpack.c.l.b16 %v1684
        %v1941 = vunpack.c.l.b16 %v1685
        %v1942 = vunpack.c.l.b16 %v1686
        %v1943 = vpack.c.b16 %v1816, %v1815
        %v1944 = vpack.c.b16 %v1818, %v1817
        %v1945 = vpack.c.b16 %v1820, %v1819
        %v1946 = vpack.c.b16 %v1822, %v1821
        %v1947 = vpack.c.b16 %v1824, %v1823
        %v1948 = vpack.c.b16 %v1826, %v1825
        %v1949 = vpack.c.b16 %v1828, %v1827
        %v1950 = vpack.c.b16 %v1830, %v1829
        %v1951 = vpack.c.b16 %v1832, %v1831
        %v1952 = vpack.c.b16 %v1834, %v1833
        %v1953 = vpack.c.b16 %v1836, %v1835
        %v1954 = vpack.c.b16 %v1838, %v1837
        %v1955 = vpack.c.b16 %v1840, %v1839
        %v1956 = vpack.c.b16 %v1842, %v1841
        %v1957 = vpack.c.b16 %v1844, %v1843
        %v1958 = vpack.c.b16 %v1846, %v1845
        %v1959 = vpack.c.b16 %v1848, %v1847
        %v1960 = vpack.c.b16 %v1850, %v1849
        %v1961 = vpack.c.b16 %v1852, %v1851
        %v1962 = vpack.c.b16 %v1854, %v1853
        %v1963 = vpack.c.b16 %v1856, %v1855
        %v1964 = vpack.c.b16 %v1858, %v1857
        %v1965 = vpack.c.b16 %v1860, %v1859
        %v1966 = vpack.c.b16 %v1862, %v1861
        %v1967 = vpack.c.b16 %v1864, %v1863
        %v1968 = vpack.c.b16 %v1866, %v1865
        %v1969 = vpack.c.b16 %v1868, %v1867
        %v1970 = vpack.c.b16 %v1870, %v1869
        %v1971 = vpack.c.b16 %v1872, %v1871
        %v1972 = vpack.c.b16 %v1874, %v1873
        %v1973 = vpack.c.b16 %v1876, %v1875
        %v1974 = vpack.c.b16 %v1878, %v1877
        %v1975 = vpack.c.b16 %v1880, %v1879
        %v1976 = vpack.c.b16 %v1882, %v1881
        %v1977 = vpack.c.b16 %v1884, %v1883
        %v1978 = vpack.c.b16 %v1886, %v1885
        %v1979 = vpack.c.b16 %v1888, %v1887
        %v1980 = vpack.c.b16 %v1890, %v1889
        %v1981 = vpack.c.b16 %v1892, %v1891
        %v1982 = vpack.c.b16 %v1894, %v1893
        %v1983 = vpack.c.b16 %v1896, %v1895
        %v1984 = vpack.c.b16 %v1898, %v1897
        %v1985 = vpack.c.b16 %v1900, %v1899
        %v1986 = vpack.c.b16 %v1902, %v1901
        %v1987 = vpack.c.b16 %v1904, %v1903
        %v1988 = vpack.c.b16 %v1906, %v1905
        %v1989 = vpack.c.b16 %v1908, %v1907
        %v1990 = vpack.c.b16 %v1910, %v1909
        %v1991 = vpack.c.b16 %v1912, %v1911
        %v1992 = vpack.c.b16 %v1914, %v1913
        %v1993 = vpack.c.b16 %v1916, %v1915
        %v1994 = vpack.c.b16 %v1918, %v1917
        %v1995 = vpack.c.b16 %v1920, %v1919
        %v1996 = vpack.c.b16 %v1922, %v1921
        %v1997 = vpack.c.b16 %v1924, %v1923
        %v1998 = vpack.c.b16 %v1926, %v1925
        %v1999 = vpack.c.b16 %v1928, %v1927
        %v2000 = vpack.c.b16 %v1930, %v1929
        %v2001 = vpack.c.b16 %v1932, %v1931
        %v2002 = vpack.c.b16 %v1934, %v1933
        %v2003 = vpack.c.b16 %v1936, %v1935
        %v2004 = vpack.c.b16 %v1938, %v1937
        %v2005 = vpack.c.b16 %v1940, %v1939
        %v2006 = vpack.c.b16 %v1942, %v1941
        %2071 = vmatprep.subr.bf16.mxu0 0
        %2072 = vmatpush1.bf16.msra.mxu0 %v1943
        %2073 = vmatprep.subr.bf16.mxu0 0
        %2074 = vmatpush1.bf16.msra.mxu0 %v1944
        %2075 = vmatprep.subr.bf16.mxu0 0
        %2076 = vmatpush1.bf16.msra.mxu0 %v1945
        %2077 = vmatprep.subr.bf16.mxu0 0
        %2078 = vmatpush1.bf16.msra.mxu0 %v1946
        %2079 = vmatprep.subr.bf16.mxu0 0
        %2080 = vmatpush1.bf16.msra.mxu0 %v1947
        %2081 = vmatprep.subr.bf16.mxu0 0
        %2082 = vmatpush1.bf16.msra.mxu0 %v1948
        %2083 = vmatprep.subr.bf16.mxu0 0
        %2084 = vmatpush1.bf16.msra.mxu0 %v1949
        %2085 = vmatprep.subr.bf16.mxu0 0
        %2086 = vmatpush1.bf16.msra.mxu0 %v1950
        %2087 = vmatprep.subr.bf16.mxu0 0
        %2088 = vmatpush1.bf16.msra.mxu0 %v1951
        %2089 = vmatprep.subr.bf16.mxu0 0
        %2090 = vmatpush1.bf16.msra.mxu0 %v1952
        %2091 = vmatprep.subr.bf16.mxu0 0
        %2092 = vmatpush1.bf16.msra.mxu0 %v1953
        %2093 = vmatprep.subr.bf16.mxu0 0
        %2094 = vmatpush1.bf16.msra.mxu0 %v1954
        %2095 = vmatprep.subr.bf16.mxu0 0
        %2096 = vmatpush1.bf16.msra.mxu0 %v1955
        %2097 = vmatprep.subr.bf16.mxu0 0
        %2098 = vmatpush1.bf16.msra.mxu0 %v1956
        %2099 = vmatprep.subr.bf16.mxu0 0
        %2100 = vmatpush1.bf16.msra.mxu0 %v1957
        %2101 = vmatprep.subr.bf16.mxu0 0
        %2102 = vmatpush1.bf16.msra.mxu0 %v1958
        %2103 = vmatprep.mubr.bf16.mxu0 %v858
        %2104 = vmatmul.mubr.bf16.gmra.mrb[0].mxu0 %v857
        %v2105 = vpop.f32.mrb[0].mxu0
        %v2106 = vadd.f32 0.0, %v2105
        %v2107 = vpop.f32.mrb[0].mxu0
        %v2108 = vpop.f32.mrb[0].mxu0
        %v2109 = vpop.f32.mrb[0].mxu0
        %2110 = vdwg.mxu0
        %2111 = vmatprep.subr.bf16.mxu0 0
        %2112 = vmatpush1.bf16.msra.mxu0 %v1959
        %2113 = vmatprep.subr.bf16.mxu0 0
        %2114 = vmatpush1.bf16.msra.mxu0 %v1960
        %2115 = vmatprep.subr.bf16.mxu0 0
        %2116 = vmatpush1.bf16.msra.mxu0 %v1961
        %2117 = vmatprep.subr.bf16.mxu0 0
        %2118 = vmatpush1.bf16.msra.mxu0 %v1962
        %2119 = vmatprep.subr.bf16.mxu0 0
        %2120 = vmatpush1.bf16.msra.mxu0 %v1963
        %2121 = vmatprep.subr.bf16.mxu0 0
        %2122 = vmatpush1.bf16.msra.mxu0 %v1964
        %2123 = vmatprep.subr.bf16.mxu0 0
        %2124 = vmatpush1.bf16.msra.mxu0 %v1965
        %2125 = vmatprep.subr.bf16.mxu0 0
        %2126 = vmatpush1.bf16.msra.mxu0 %v1966
        %2127 = vmatprep.subr.bf16.mxu0 0
        %2128 = vmatpush1.bf16.msra.mxu0 %v1967
        %2129 = vmatprep.subr.bf16.mxu0 0
        %2130 = vmatpush1.bf16.msra.mxu0 %v1968
        %2131 = vmatprep.subr.bf16.mxu0 0
        %2132 = vmatpush1.bf16.msra.mxu0 %v1969
        %2133 = vmatprep.subr.bf16.mxu0 0
        %2134 = vmatpush1.bf16.msra.mxu0 %v1970
        %2135 = vmatprep.subr.bf16.mxu0 0
        %2136 = vmatpush1.bf16.msra.mxu0 %v1971
        %2137 = vmatprep.subr.bf16.mxu0 0
        %2138 = vmatpush1.bf16.msra.mxu0 %v1972
        %2139 = vmatprep.subr.bf16.mxu0 0
        %2140 = vmatpush1.bf16.msra.mxu0 %v1973
        %2141 = vmatprep.subr.bf16.mxu0 0
        %2142 = vmatpush1.bf16.msra.mxu0 %v1974
        %2143 = vmatprep.mubr.bf16.mxu0 %v860
        %2144 = vmatmul.mubr.bf16.gmra.mrb[0].mxu0 %v859
        %v2145 = vpop.f32.mrb[0].mxu0
        %v2146 = vadd.f32 %v2106, %v2145
        %v2147 = vpop.f32.mrb[0].mxu0
        %v2148 = vpop.f32.mrb[0].mxu0
        %v2149 = vpop.f32.mrb[0].mxu0
        %2150 = vdwg.mxu0
        %2151 = vmatprep.subr.bf16.mxu0 0
        %2152 = vmatpush1.bf16.msra.mxu0 %v1975
        %2153 = vmatprep.subr.bf16.mxu0 0
        %2154 = vmatpush1.bf16.msra.mxu0 %v1976
        %2155 = vmatprep.subr.bf16.mxu0 0
        %2156 = vmatpush1.bf16.msra.mxu0 %v1977
        %2157 = vmatprep.subr.bf16.mxu0 0
        %2158 = vmatpush1.bf16.msra.mxu0 %v1978
        %2159 = vmatprep.subr.bf16.mxu0 0
        %2160 = vmatpush1.bf16.msra.mxu0 %v1979
        %2161 = vmatprep.subr.bf16.mxu0 0
        %2162 = vmatpush1.bf16.msra.mxu0 %v1980
        %2163 = vmatprep.subr.bf16.mxu0 0
        %2164 = vmatpush1.bf16.msra.mxu0 %v1981
        %2165 = vmatprep.subr.bf16.mxu0 0
        %2166 = vmatpush1.bf16.msra.mxu0 %v1982
        %2167 = vmatprep.subr.bf16.mxu0 0
        %2168 = vmatpush1.bf16.msra.mxu0 %v1983
        %2169 = vmatprep.subr.bf16.mxu0 0
        %2170 = vmatpush1.bf16.msra.mxu0 %v1984
        %2171 = vmatprep.subr.bf16.mxu0 0
        %2172 = vmatpush1.bf16.msra.mxu0 %v1985
        %2173 = vmatprep.subr.bf16.mxu0 0
        %2174 = vmatpush1.bf16.msra.mxu0 %v1986
        %2175 = vmatprep.subr.bf16.mxu0 0
        %2176 = vmatpush1.bf16.msra.mxu0 %v1987
        %2177 = vmatprep.subr.bf16.mxu0 0
        %2178 = vmatpush1.bf16.msra.mxu0 %v1988
        %2179 = vmatprep.subr.bf16.mxu0 0
        %2180 = vmatpush1.bf16.msra.mxu0 %v1989
        %2181 = vmatprep.subr.bf16.mxu0 0
        %2182 = vmatpush1.bf16.msra.mxu0 %v1990
        %2183 = vmatprep.mubr.bf16.mxu0 %v862
        %2184 = vmatmul.mubr.bf16.gmra.mrb[0].mxu0 %v861
        %v2185 = vpop.f32.mrb[0].mxu0
        %v2186 = vadd.f32 %v2146, %v2185
        %v2187 = vpop.f32.mrb[0].mxu0
        %v2188 = vpop.f32.mrb[0].mxu0
        %v2189 = vpop.f32.mrb[0].mxu0
        %2190 = vdwg.mxu0
        %2191 = vmatprep.subr.bf16.mxu0 0
        %2192 = vmatpush1.bf16.msra.mxu0 %v1991
        %2193 = vmatprep.subr.bf16.mxu0 0
        %2194 = vmatpush1.bf16.msra.mxu0 %v1992
        %2195 = vmatprep.subr.bf16.mxu0 0
        %2196 = vmatpush1.bf16.msra.mxu0 %v1993
        %2197 = vmatprep.subr.bf16.mxu0 0
        %2198 = vmatpush1.bf16.msra.mxu0 %v1994
        %2199 = vmatprep.subr.bf16.mxu0 0
        %2200 = vmatpush1.bf16.msra.mxu0 %v1995
        %2201 = vmatprep.subr.bf16.mxu0 0
        %2202 = vmatpush1.bf16.msra.mxu0 %v1996
        %2203 = vmatprep.subr.bf16.mxu0 0
        %2204 = vmatpush1.bf16.msra.mxu0 %v1997
        %2205 = vmatprep.subr.bf16.mxu0 0
        %2206 = vmatpush1.bf16.msra.mxu0 %v1998
        %2207 = vmatprep.subr.bf16.mxu0 0
        %2208 = vmatpush1.bf16.msra.mxu0 %v1999
        %2209 = vmatprep.subr.bf16.mxu0 0
        %2210 = vmatpush1.bf16.msra.mxu0 %v2000
        %2211 = vmatprep.subr.bf16.mxu0 0
        %2212 = vmatpush1.bf16.msra.mxu0 %v2001
        %2213 = vmatprep.subr.bf16.mxu0 0
        %2214 = vmatpush1.bf16.msra.mxu0 %v2002
        %2215 = vmatprep.subr.bf16.mxu0 0
        %2216 = vmatpush1.bf16.msra.mxu0 %v2003
        %2217 = vmatprep.subr.bf16.mxu0 0
        %2218 = vmatpush1.bf16.msra.mxu0 %v2004
        %2219 = vmatprep.subr.bf16.mxu0 0
        %2220 = vmatpush1.bf16.msra.mxu0 %v2005
        %2221 = vmatprep.subr.bf16.mxu0 0
        %2222 = vmatpush1.bf16.msra.mxu0 %v2006
        %2223 = vmatprep.mubr.bf16.mxu0 %v864
        %2224 = vmatmul.mubr.bf16.gmra.mrb[0].mxu0 %v863
        %v2225 = vpop.f32.mrb[0].mxu0
        %v2226 = vadd.f32 %v2186, %v2225
        %v2227 = vpop.f32.mrb[0].mxu0
        %v2228 = vpop.f32.mrb[0].mxu0
        %v2229 = vpop.f32.mrb[0].mxu0
        %2230 = vdwg.mxu0
        %2231 = vst.msk [vmem:[%s5] sm:$0xff] %vm235, %v2226
      $region44: #{lamp_forward.1} parent=35 // pred_fallthru
        _
      // Predicated region
      $region45: #{lamp_forward.1} parent=35 // pred_check
        %p2232 = pneg %p129
      $region46: #{lamp_forward.1} parent=35 // pred_check_branch
        %2234 = sbr.rel (%p2232) target = $region48
      $region47: #{lamp_forward.1} parent=35 // pred_region
        _
      $region48: #{lamp_forward.1} parent=35 // pred_fallthru
        _
      // Predicated region
      $region49: #{lamp_forward.1} parent=35 // pred_check
        %p2235 = pneg %p129
      $region50: #{lamp_forward.1} parent=35 // pred_check_branch
        %2237 = sbr.rel (%p2235) target = $region52
      $region51: #{lamp_forward.1} parent=35 // pred_region
        _
      $region52: #{lamp_forward.1} parent=35 // pred_fallthru
        _
    $region36: #{lamp_forward.1} parent=5 // pred_fallthru
      _
    %p2238 = scmp.le.s32.totalorder 2, %s17
    // Predicated region
    $region53: #{lamp_forward.1} parent=5 // pred_check
      %p2239 = pneg %p2238
    $region54: #{lamp_forward.1} parent=5 // pred_check_branch
      %2241 = sbr.rel (%p2239) target = $region56
    $region55: #{lamp_forward.1} parent=5 // pred_region
      %s2242 = ssub.s32 %s17, 2
    $region56: #{lamp_forward.1} parent=5 // pred_fallthru
      _
  $region6: #{lamp_forward.1} parent=0 // loop_footer
    %s21 = sadd.s32 1, %s17
  $region7: #{lamp_forward.1} parent=0 // loop_footer_branch
    %16 = sbr.rel target = $region3
  $region8: #{lamp_forward.1} parent=0 // loop_exit
    _

</llo_original>
